<compile_context>
chip_gen: v7x
topology: tpu7x:2x2x1
jax: 0.10.0
libtpu: 0.0.40
codegen_flags: <defaults>
</compile_context>

<pallas_src>
import jax
import jax.numpy as jnp
from jax import lax
from jax.experimental import pallas as pl
from jax.experimental.pallas import tpu as pltpu


def _deeplab_pool1_kernel(p_ref, w1_ref, b1_ref, w2_ref, b2_ref, o_ref,
                          shifts_ref, y2_ref):
    # p_ref     : (1, 1, Hs+3, W, 27) bf16  im2col patches for conv1 rows r0-2 .. r0+Hs
    # w1_ref    : (27, 64)  bf16            conv1 weights, row = (dh*3 + dw)*3 + cin
    # b1_ref    : (1, 64)   f32
    # w2_ref    : (3, 192, 64) bf16         conv2 weights, [dh, dw*64 + cin, cout]
    # b2_ref    : (1, 64)   f32
    # o_ref     : (1, Hs//2, W//2, 64) f32  pooled output rows of this strip
    # shifts_ref: VMEM (Hs+3, W, 192) bf16  dw-packed conv1 output (+row halos)
    # y2_ref    : VMEM (Hs+1, W, 64)  f32   conv2 output rows r0-1 .. r0+Hs-1
    f32, bf16 = jnp.float32, jnp.bfloat16
    Hh, W, _ = shifts_ref.shape                      # Hh = Hs + 3
    Hs = Hh - 3
    HOs, WO, CO = o_ref.shape[1], o_ref.shape[2], o_ref.shape[3]
    st = pl.program_id(1)
    last = pl.num_programs(1) - 1

    # ---- conv1_1 (3 -> 64): one im2col MXU matmul; bias + ReLU in f32 ----
    patches = p_ref[0, 0].reshape(Hh * W, 27)
    y1 = jnp.dot(patches, w1_ref[...], preferred_element_type=f32)
    y1 = jnp.maximum(y1 + b1_ref[...], 0.0).reshape(Hh, W, CO).astype(bf16)

    # ---- dw-packed halo: lanes [0:64]=col w-1, [64:128]=col w, [128:192]=col w+1
    # (direct sub-slice stores, no concatenated full-slab temporaries)
    shifts_ref[:, :, 64:128] = y1
    shifts_ref[:, 1:, 0:64] = y1[:, :W - 1, :]
    shifts_ref[:, 0:1, 0:64] = jnp.zeros((Hh, 1, CO), bf16)
    shifts_ref[:, :W - 1, 128:192] = y1[:, 1:, :]
    shifts_ref[:, W - 1:, 128:192] = jnp.zeros((Hh, 1, CO), bf16)

    # rows outside the full image (top / bottom halo) must read as zero for conv2
    @pl.when(st == 0)
    def _():
        shifts_ref[0:2] = jnp.zeros((2, W, 192), bf16)

    @pl.when(st == last)
    def _():
        shifts_ref[Hs + 2:Hs + 3] = jnp.zeros((1, W, 192), bf16)

    # ---- conv1_2 (64 -> 64): 3 MXU matmuls with K = 192, unbroken f32 acc chain ----
    M = (Hs + 1) * W
    acc = jnp.broadcast_to(b2_ref[...], (M, CO))
    for dh in range(3):
        lhs = shifts_ref[dh:dh + Hs + 1, :, :].reshape(M, 192)
        acc = acc + jnp.dot(lhs, w2_ref[dh], preferred_element_type=f32)
    y2_ref[...] = jnp.maximum(acc, 0.0).reshape(Hs + 1, W, CO)

    # the pool's zero-pad row above the image (first strip only; post-ReLU >= 0,
    # so zero padding is equivalent to -inf padding)
    @pl.when(st == 0)
    def _():
        y2_ref[0:1] = jnp.zeros((1, W, CO), f32)

    # ---- MaxPool2d(kernel=3, stride=2, padding=1) ----
    center = y2_ref[:, pl.ds(0, WO, stride=2), :]            # cols 2*ow
    right = y2_ref[:, pl.ds(1, WO, stride=2), :]             # cols 2*ow + 1
    if WO > 1:
        ltail = y2_ref[:, pl.ds(1, WO - 1, stride=2), :]     # cols 2*ow - 1 (ow >= 1)
        left = jnp.concatenate([jnp.zeros((Hs + 1, 1, CO), f32), ltail], axis=1)
    else:
        left = jnp.zeros((Hs + 1, WO, CO), f32)
    cm = jnp.maximum(jnp.maximum(center, right), left)       # (Hs+1, WO, 64)

    # rows needed for pool row oh: 2*oh, 2*oh+1, 2*oh+2 (all local to this strip)
    ev = cm[0:Hs].reshape(HOs, 2, WO, CO)                    # [:,0]=2oh  [:,1]=2oh+1
    od = cm[1:Hs + 1].reshape(HOs, 2, WO, CO)                # [:,1]=2oh+2
    o_ref[0] = jnp.maximum(jnp.maximum(ev[:, 0], ev[:, 1]), od[:, 1])


def _pick_strip_height(H, W, budget_px):
    """Largest even divisor Hs of H with Hs * W <= budget_px (min 2)."""
    best = 2
    for hs in range(2, H + 1, 2):
        if H % hs == 0 and hs * W <= budget_px:
            best = hs
    return best


def deeplab_pool1(x_nchw, w1_hwio, b1, w2_hwio, b2, *, strip_budget_px=4096):
    """x: (N, 3, H, W) f32, H and W even -> (N, 64, H//2, W//2) f32."""
    x = jnp.transpose(x_nchw, (0, 2, 3, 1)).astype(jnp.float32)    # NHWC
    N, H, W, C = x.shape
    assert C == 3 and H % 2 == 0 and W % 2 == 0 and H >= 2 and W >= 2, (N, C, H, W)
    # TODO(synk): odd H/W (PyTorch output (H+1)//2, e.g. 513x513) is not handled.
    HO, WO = H // 2, W // 2

    Hs = _pick_strip_height(H, W, strip_budget_px)                 # even, divides H
    S = H // Hs

    # im2col patches for "virtual" conv1 rows -2 .. H (zero outside the image):
    # patches[n, h, w, (dh*3+dw)*3 + c] = x_padded[n, (h-2)+dh-1, w+dw-1, c]
    xpp = jnp.pad(x, ((0, 0), (3, 2), (1, 1), (0, 0)))
    taps = []
    for dh in range(3):
        for dw in range(3):
            taps.append(lax.slice(xpp, (0, dh, dw, 0), (N, dh + H + 3, dw + W, 3)))
    patches = jnp.concatenate(taps, axis=-1).astype(jnp.bfloat16)  # (N, H+3, W, 27)
    # per-strip blocks with the 3-row conv1 halo duplicated (contiguous per step)
    p_strips = jnp.stack(
        [lax.slice_in_dim(patches, s * Hs, s * Hs + Hs + 3, axis=1) for s in range(S)],
        axis=1)                                                    # (N, S, Hs+3, W, 27)

    w1p = w1_hwio.reshape(27, 64).astype(jnp.bfloat16)             # row = (dh*3+dw)*3+cin
    w2p = w2_hwio.reshape(3, 192, 64).astype(jnp.bfloat16)         # [dh, dw*64+cin, cout]
    b1r = b1.reshape(1, 64).astype(jnp.float32)
    b2r = b2.reshape(1, 64).astype(jnp.float32)

    out = pl.pallas_call(
        _deeplab_pool1_kernel,
        out_shape=jax.ShapeDtypeStruct((N, HO, WO, 64), jnp.float32),
        grid=(N, S),
        in_specs=[
            pl.BlockSpec((1, 1, Hs + 3, W, 27), lambda b, s: (b, s, 0, 0, 0)),
            pl.BlockSpec((27, 64), lambda b, s: (0, 0)),
            pl.BlockSpec((1, 64), lambda b, s: (0, 0)),
            pl.BlockSpec((3, 192, 64), lambda b, s: (0, 0, 0)),
            pl.BlockSpec((1, 64), lambda b, s: (0, 0)),
        ],
        # TODO(synk): output minor dim is 64 (< 128 lanes) -> masked stores; a
        # lane-dense repack of the (small) pool output was judged not worth the
        # extra in-kernel relayout.
        out_specs=pl.BlockSpec((1, Hs // 2, WO, 64), lambda b, s: (b, s, 0, 0)),
        scratch_shapes=[
            pltpu.VMEM((Hs + 3, W, 192), jnp.bfloat16),   # dw-packed conv1 output
            pltpu.VMEM((Hs + 1, W, 64), jnp.float32),     # conv2 output (post-ReLU)
        ],
        compiler_params=pltpu.CompilerParams(
            dimension_semantics=("parallel", "parallel"),
            vmem_limit_bytes=48 * 1024 * 1024),
    )(p_strips, w1p, b1r, w2p, b2r)

    return jnp.transpose(out, (0, 3, 1, 2))                        # back to NCHW


def _reference(x_nchw, w1, b1, w2, b2):
    """Pure-JAX reference (NHWC conv + reduce_window max pool)."""
    x = jnp.transpose(x_nchw, (0, 2, 3, 1))
    dn = ("NHWC", "HWIO", "NHWC")
    y = lax.conv_general_dilated(x, w1, (1, 1), "SAME", dimension_numbers=dn,
                                 precision=lax.Precision.HIGHEST)
    y = jnp.maximum(y + b1.reshape(1, 1, 1, -1), 0.0)
    y = lax.conv_general_dilated(y, w2, (1, 1), "SAME", dimension_numbers=dn,
                                 precision=lax.Precision.HIGHEST)
    y = jnp.maximum(y + b2.reshape(1, 1, 1, -1), 0.0)
    y = lax.reduce_window(y, -jnp.inf, lax.max,
                          window_dimensions=(1, 3, 3, 1),
                          window_strides=(1, 2, 2, 1),
                          padding=((0, 0), (1, 1), (1, 1), (0, 0)))
    return jnp.transpose(y, (0, 3, 1, 2))


if __name__ == "__main__":
    key = jax.random.PRNGKey(0)
    kx, kw1, kb1, kw2, kb2 = jax.random.split(key, 5)

    N, C, H, W = 2, 3, 16, 16
    x = jax.random.normal(kx, (N, C, H, W), dtype=jnp.float32)

    # HWIO conv weights (same layout as the pure-JAX reference; matches
    # nn.Conv2d(3,64,3,padding=1) / nn.Conv2d(64,64,3,padding=1) up to layout).
    w1 = jax.random.normal(kw1, (3, 3, 3, 64), dtype=jnp.float32) * 0.1
    b1 = jax.random.normal(kb1, (64,), dtype=jnp.float32) * 0.1
    w2 = jax.random.normal(kw2, (3, 3, 64, 64), dtype=jnp.float32) * 0.05
    b2 = jax.random.normal(kb2, (64,), dtype=jnp.float32) * 0.1

    ref = jax.block_until_ready(_reference(x, w1, b1, w2, b2))

    # single-strip path (whole image in one grid step along H)
    out = jax.block_until_ready(deeplab_pool1(x, w1, b1, w2, b2))
    assert out.shape == (N, 64, H // 2, W // 2), out.shape
    err = float(jnp.max(jnp.abs(out - ref)))
    assert jnp.allclose(out, ref, rtol=2e-2, atol=2e-2), err   # bf16 MXU operands

    # multi-strip path: force 4 row-strips of height 4 to exercise the halo /
    # boundary-zeroing logic used at real image sizes.
    out_s = jax.block_until_ready(
        deeplab_pool1(x, w1, b1, w2, b2, strip_budget_px=64))
    err_s = float(jnp.max(jnp.abs(out_s - ref)))
    assert jnp.allclose(out_s, ref, rtol=2e-2, atol=2e-2), err_s

    print("KERNEL_OK")
</pallas_src>

<mosaic_0001>
module attributes {stable_mosaic.version = 11 : i64} {
  func.func @_deeplab_pool1_kernel(%arg0: i32, %arg1: i32, %arg2: memref<1x1x19x16x27xbf16, #tpu.memory_space<vmem>>, %arg3: memref<27x64xbf16, #tpu.memory_space<vmem>>, %arg4: memref<1x64xf32, #tpu.memory_space<vmem>>, %arg5: memref<3x192x64xbf16, #tpu.memory_space<vmem>>, %arg6: memref<1x64xf32, #tpu.memory_space<vmem>>, %arg7: memref<1x8x8x64xf32, #tpu.memory_space<vmem>>, %arg8: memref<19x16x192xbf16, #tpu.memory_space<vmem>>, %arg9: memref<17x16x64xf32, #tpu.memory_space<vmem>>) attributes {dimension_semantics = [#tpu.dimension_semantics<parallel>, #tpu.dimension_semantics<parallel>], iteration_bounds = array<i64: 2, 1>, scalar_prefetch = 0 : i64, scratch_operands = 2 : i64, tpu.core_type = #tpu.core_type<tc>, window_params = [{transform_indices = @transform_0, window_bounds = array<i64: 1, 1, 19, 16, 27>}, {pipeline_mode = #tpu.pipeline_mode<synchronous>, transform_indices = @transform_1, window_bounds = array<i64: 27, 64>}, {pipeline_mode = #tpu.pipeline_mode<synchronous>, transform_indices = @transform_2, window_bounds = array<i64: 1, 64>}, {pipeline_mode = #tpu.pipeline_mode<synchronous>, transform_indices = @transform_3, window_bounds = array<i64: 3, 192, 64>}, {pipeline_mode = #tpu.pipeline_mode<synchronous>, transform_indices = @transform_4, window_bounds = array<i64: 1, 64>}, {transform_indices = @transform_5, window_bounds = array<i64: 1, 8, 8, 64>}]} {
    %c0 = arith.constant 0 : index
    %c0_0 = arith.constant 0 : index
    %c0_1 = arith.constant 0 : index
    %c0_2 = arith.constant 0 : index
    %c0_3 = arith.constant 0 : index
    %0 = vector.load %arg2[%c0, %c0_0, %c0_1, %c0_2, %c0_3] : memref<1x1x19x16x27xbf16, #tpu.memory_space<vmem>>, vector<1x1x19x16x27xbf16>
    %1 = vector.shape_cast %0 : vector<1x1x19x16x27xbf16> to vector<19x16x27xbf16>
    %2 = vector.shape_cast %1 : vector<19x16x27xbf16> to vector<304x27xbf16>
    %c0_4 = arith.constant 0 : index
    %c0_5 = arith.constant 0 : index
    %3 = vector.load %arg3[%c0_4, %c0_5] : memref<27x64xbf16, #tpu.memory_space<vmem>>, vector<27x64xbf16>
    %cst = arith.constant dense<0.000000e+00> : vector<304x64xf32>
    %4 = tpu.matmul %2, %3, %cst {dimension_numbers = #tpu.dot_dimension_numbers<[1], [0], [0], [1], [0, 0, 1, 1], [], []>} : vector<304x27xbf16>, vector<27x64xbf16>, vector<304x64xf32> -> vector<304x64xf32>
    %c0_6 = arith.constant 0 : index
    %c0_7 = arith.constant 0 : index
    %5 = vector.load %arg4[%c0_6, %c0_7] : memref<1x64xf32, #tpu.memory_space<vmem>>, vector<1x64xf32>
    %6 = vector.broadcast %5 : vector<1x64xf32> to vector<304x64xf32>
    %7 = arith.addf %4, %6 : vector<304x64xf32>
    %cst_8 = arith.constant 0.000000e+00 : f32
    %8 = vector.broadcast %cst_8 : f32 to vector<304x64xf32>
    %9 = arith.maximumf %7, %8 : vector<304x64xf32>
    %10 = vector.shape_cast %9 : vector<304x64xf32> to vector<19x16x64xf32>
    %11 = arith.truncf %10 : vector<19x16x64xf32> to vector<19x16x64xbf16>
    %c0_9 = arith.constant 0 : index
    %c0_10 = arith.constant 0 : index
    %c64 = arith.constant 64 : index
    %12 = vector.load %arg8[%c0_9, %c0_10, %c64] : memref<19x16x192xbf16, #tpu.memory_space<vmem>>, vector<19x16x64xbf16>
    tpu.vector_store %arg8[%c0_9, %c0_10, %c64], %11 {strides = array<i32>} : memref<19x16x192xbf16, #tpu.memory_space<vmem>>, vector<19x16x64xbf16>,
    %13 = vector.extract_strided_slice %11 {offsets = [0, 0, 0], sizes = [19, 15, 64], strides = [1, 1, 1]} : vector<19x16x64xbf16> to vector<19x15x64xbf16>
    %c0_11 = arith.constant 0 : index
    %c1 = arith.constant 1 : index
    %c0_12 = arith.constant 0 : index
    %14 = vector.load %arg8[%c0_11, %c1, %c0_12] : memref<19x16x192xbf16, #tpu.memory_space<vmem>>, vector<19x15x64xbf16>
    tpu.vector_store %arg8[%c0_11, %c1, %c0_12], %13 {strides = array<i32>} : memref<19x16x192xbf16, #tpu.memory_space<vmem>>, vector<19x15x64xbf16>,
    %cst_13 = arith.constant 0.000000e+00 : bf16
    %15 = vector.broadcast %cst_13 : bf16 to vector<19x1x64xbf16>
    %c0_14 = arith.constant 0 : index
    %c0_15 = arith.constant 0 : index
    %c0_16 = arith.constant 0 : index
    %16 = vector.load %arg8[%c0_14, %c0_15, %c0_16] : memref<19x16x192xbf16, #tpu.memory_space<vmem>>, vector<19x1x64xbf16>
    tpu.vector_store %arg8[%c0_14, %c0_15, %c0_16], %15 {strides = array<i32>} : memref<19x16x192xbf16, #tpu.memory_space<vmem>>, vector<19x1x64xbf16>,
    %17 = vector.extract_strided_slice %11 {offsets = [0, 1, 0], sizes = [19, 15, 64], strides = [1, 1, 1]} : vector<19x16x64xbf16> to vector<19x15x64xbf16>
    %c0_17 = arith.constant 0 : index
    %c0_18 = arith.constant 0 : index
    %c128 = arith.constant 128 : index
    %18 = vector.load %arg8[%c0_17, %c0_18, %c128] : memref<19x16x192xbf16, #tpu.memory_space<vmem>>, vector<19x15x64xbf16>
    tpu.vector_store %arg8[%c0_17, %c0_18, %c128], %17 {strides = array<i32>} : memref<19x16x192xbf16, #tpu.memory_space<vmem>>, vector<19x15x64xbf16>,
    %cst_19 = arith.constant 0.000000e+00 : bf16
    %19 = vector.broadcast %cst_19 : bf16 to vector<19x1x64xbf16>
    %c0_20 = arith.constant 0 : index
    %c15 = arith.constant 15 : index
    %c128_21 = arith.constant 128 : index
    %20 = vector.load %arg8[%c0_20, %c15, %c128_21] : memref<19x16x192xbf16, #tpu.memory_space<vmem>>, vector<19x1x64xbf16>
    tpu.vector_store %arg8[%c0_20, %c15, %c128_21], %19 {strides = array<i32>} : memref<19x16x192xbf16, #tpu.memory_space<vmem>>, vector<19x1x64xbf16>,
    %c0_i32 = arith.constant 0 : i32
    %21 = arith.cmpi eq, %arg1, %c0_i32 : i32
    %22 = arith.extui %21 : i1 to i32
    %c0_i32_22 = arith.constant 0 : i32
    %23 = arith.cmpi ne, %22, %c0_i32_22 : i32
    scf.if %23 {
      %cst_67 = arith.constant 0.000000e+00 : bf16
      %77 = vector.broadcast %cst_67 : bf16 to vector<2x16x192xbf16>
      %c0_68 = arith.constant 0 : index
      %c0_69 = arith.constant 0 : index
      %c0_70 = arith.constant 0 : index
      %78 = vector.load %arg8[%c0_68, %c0_69, %c0_70] : memref<19x16x192xbf16, #tpu.memory_space<vmem>>, vector<2x16x192xbf16>
      tpu.vector_store %arg8[%c0_68, %c0_69, %c0_70], %77 {strides = array<i32>} : memref<19x16x192xbf16, #tpu.memory_space<vmem>>, vector<2x16x192xbf16>,
    } else {
    }
    %c0_i32_23 = arith.constant 0 : i32
    %24 = arith.cmpi eq, %arg1, %c0_i32_23 : i32
    %25 = arith.extui %24 : i1 to i32
    %c0_i32_24 = arith.constant 0 : i32
    %26 = arith.cmpi ne, %25, %c0_i32_24 : i32
    scf.if %26 {
      %cst_67 = arith.constant 0.000000e+00 : bf16
      %77 = vector.broadcast %cst_67 : bf16 to vector<1x16x192xbf16>
      %c18 = arith.constant 18 : index
      %c0_68 = arith.constant 0 : index
      %c0_69 = arith.constant 0 : index
      %78 = vector.load %arg8[%c18, %c0_68, %c0_69] : memref<19x16x192xbf16, #tpu.memory_space<vmem>>, vector<1x16x192xbf16>
      tpu.vector_store %arg8[%c18, %c0_68, %c0_69], %77 {strides = array<i32>} : memref<19x16x192xbf16, #tpu.memory_space<vmem>>, vector<1x16x192xbf16>,
    } else {
    }
    %c0_25 = arith.constant 0 : index
    %c0_26 = arith.constant 0 : index
    %27 = vector.load %arg6[%c0_25, %c0_26] : memref<1x64xf32, #tpu.memory_space<vmem>>, vector<1x64xf32>
    %28 = vector.shape_cast %27 : vector<1x64xf32> to vector<1x64xf32>
    %29 = vector.broadcast %28 : vector<1x64xf32> to vector<272x64xf32>
    %c0_27 = arith.constant 0 : index
    %c0_28 = arith.constant 0 : index
    %c0_29 = arith.constant 0 : index
    %30 = vector.load %arg8[%c0_27, %c0_28, %c0_29] : memref<19x16x192xbf16, #tpu.memory_space<vmem>>, vector<17x16x192xbf16>
    %31 = vector.shape_cast %30 : vector<17x16x192xbf16> to vector<272x192xbf16>
    %c0_30 = arith.constant 0 : index
    %c0_31 = arith.constant 0 : index
    %c0_32 = arith.constant 0 : index
    %32 = vector.load %arg5[%c0_30, %c0_31, %c0_32] : memref<3x192x64xbf16, #tpu.memory_space<vmem>>, vector<1x192x64xbf16>
    %33 = vector.shape_cast %32 : vector<1x192x64xbf16> to vector<192x64xbf16>
    %cst_33 = arith.constant dense<0.000000e+00> : vector<272x64xf32>
    %34 = tpu.matmul %31, %33, %cst_33 {dimension_numbers = #tpu.dot_dimension_numbers<[1], [0], [0], [1], [0, 0, 1, 1], [], []>} : vector<272x192xbf16>, vector<192x64xbf16>, vector<272x64xf32> -> vector<272x64xf32>
    %35 = arith.addf %29, %34 : vector<272x64xf32>
    %c1_34 = arith.constant 1 : index
    %c0_35 = arith.constant 0 : index
    %c0_36 = arith.constant 0 : index
    %36 = vector.load %arg8[%c1_34, %c0_35, %c0_36] : memref<19x16x192xbf16, #tpu.memory_space<vmem>>, vector<17x16x192xbf16>
    %37 = vector.shape_cast %36 : vector<17x16x192xbf16> to vector<272x192xbf16>
    %c1_37 = arith.constant 1 : index
    %c0_38 = arith.constant 0 : index
    %c0_39 = arith.constant 0 : index
    %38 = vector.load %arg5[%c1_37, %c0_38, %c0_39] : memref<3x192x64xbf16, #tpu.memory_space<vmem>>, vector<1x192x64xbf16>
    %39 = vector.shape_cast %38 : vector<1x192x64xbf16> to vector<192x64xbf16>
    %cst_40 = arith.constant dense<0.000000e+00> : vector<272x64xf32>
    %40 = tpu.matmul %37, %39, %cst_40 {dimension_numbers = #tpu.dot_dimension_numbers<[1], [0], [0], [1], [0, 0, 1, 1], [], []>} : vector<272x192xbf16>, vector<192x64xbf16>, vector<272x64xf32> -> vector<272x64xf32>
    %41 = arith.addf %35, %40 : vector<272x64xf32>
    %c2 = arith.constant 2 : index
    %c0_41 = arith.constant 0 : index
    %c0_42 = arith.constant 0 : index
    %42 = vector.load %arg8[%c2, %c0_41, %c0_42] : memref<19x16x192xbf16, #tpu.memory_space<vmem>>, vector<17x16x192xbf16>
    %43 = vector.shape_cast %42 : vector<17x16x192xbf16> to vector<272x192xbf16>
    %c2_43 = arith.constant 2 : index
    %c0_44 = arith.constant 0 : index
    %c0_45 = arith.constant 0 : index
    %44 = vector.load %arg5[%c2_43, %c0_44, %c0_45] : memref<3x192x64xbf16, #tpu.memory_space<vmem>>, vector<1x192x64xbf16>
    %45 = vector.shape_cast %44 : vector<1x192x64xbf16> to vector<192x64xbf16>
    %cst_46 = arith.constant dense<0.000000e+00> : vector<272x64xf32>
    %46 = tpu.matmul %43, %45, %cst_46 {dimension_numbers = #tpu.dot_dimension_numbers<[1], [0], [0], [1], [0, 0, 1, 1], [], []>} : vector<272x192xbf16>, vector<192x64xbf16>, vector<272x64xf32> -> vector<272x64xf32>
    %47 = arith.addf %41, %46 : vector<272x64xf32>
    %cst_47 = arith.constant 0.000000e+00 : f32
    %48 = vector.broadcast %cst_47 : f32 to vector<272x64xf32>
    %49 = arith.maximumf %47, %48 : vector<272x64xf32>
    %50 = vector.shape_cast %49 : vector<272x64xf32> to vector<17x16x64xf32>
    %c0_48 = arith.constant 0 : index
    %c0_49 = arith.constant 0 : index
    %c0_50 = arith.constant 0 : index
    %51 = vector.load %arg9[%c0_48, %c0_49, %c0_50] : memref<17x16x64xf32, #tpu.memory_space<vmem>>, vector<17x16x64xf32>
    tpu.vector_store %arg9[%c0_48, %c0_49, %c0_50], %50 {strides = array<i32>} : memref<17x16x64xf32, #tpu.memory_space<vmem>>, vector<17x16x64xf32>,
    %c0_i32_51 = arith.constant 0 : i32
    %52 = arith.cmpi eq, %arg1, %c0_i32_51 : i32
    %53 = arith.extui %52 : i1 to i32
    %c0_i32_52 = arith.constant 0 : i32
    %54 = arith.cmpi ne, %53, %c0_i32_52 : i32
    scf.if %54 {
      %cst_67 = arith.constant 0.000000e+00 : f32
      %77 = vector.broadcast %cst_67 : f32 to vector<1x16x64xf32>
      %c0_68 = arith.constant 0 : index
      %c0_69 = arith.constant 0 : index
      %c0_70 = arith.constant 0 : index
      %78 = vector.load %arg9[%c0_68, %c0_69, %c0_70] : memref<17x16x64xf32, #tpu.memory_space<vmem>>, vector<1x16x64xf32>
      tpu.vector_store %arg9[%c0_68, %c0_69, %c0_70], %77 {strides = array<i32>} : memref<17x16x64xf32, #tpu.memory_space<vmem>>, vector<1x16x64xf32>,
    } else {
    }
    %c0_53 = arith.constant 0 : index
    %c0_54 = arith.constant 0 : index
    %c0_55 = arith.constant 0 : index
    %55 = tpu.strided_load %arg9[%c0_53, %c0_54, %c0_55] {strides = array<i32: 1, 2, 1>} : memref<17x16x64xf32, #tpu.memory_space<vmem>>, vector<17x8x64xf32>
    %c0_56 = arith.constant 0 : index
    %c1_57 = arith.constant 1 : index
    %c0_58 = arith.constant 0 : index
    %56 = tpu.strided_load %arg9[%c0_56, %c1_57, %c0_58] {strides = array<i32: 1, 2, 1>} : memref<17x16x64xf32, #tpu.memory_space<vmem>>, vector<17x8x64xf32>
    %c0_59 = arith.constant 0 : index
    %c1_60 = arith.constant 1 : index
    %c0_61 = arith.constant 0 : index
    %57 = tpu.strided_load %arg9[%c0_59, %c1_60, %c0_61] {strides = array<i32: 1, 2, 1>} : memref<17x16x64xf32, #tpu.memory_space<vmem>>, vector<17x7x64xf32>
    %cst_62 = arith.constant 0.000000e+00 : f32
    %58 = vector.broadcast %cst_62 : f32 to vector<17x1x64xf32>
    %59 = tpu.concatenate %58, %57 in 1 : vector<17x1x64xf32>, vector<17x7x64xf32> -> vector<17x8x64xf32>
    %60 = arith.maximumf %55, %56 : vector<17x8x64xf32>
    %61 = arith.maximumf %60, %59 : vector<17x8x64xf32>
    %62 = vector.extract_strided_slice %61 {offsets = [0, 0, 0], sizes = [16, 8, 64], strides = [1, 1, 1]} : vector<17x8x64xf32> to vector<16x8x64xf32>
    %63 = vector.shape_cast %62 : vector<16x8x64xf32> to vector<8x2x8x64xf32>
    %64 = vector.extract_strided_slice %61 {offsets = [1, 0, 0], sizes = [16, 8, 64], strides = [1, 1, 1]} : vector<17x8x64xf32> to vector<16x8x64xf32>
    %65 = vector.shape_cast %64 : vector<16x8x64xf32> to vector<8x2x8x64xf32>
    %66 = vector.extract_strided_slice %63 {offsets = [0, 0, 0, 0], sizes = [8, 1, 8, 64], strides = [1, 1, 1, 1]} : vector<8x2x8x64xf32> to vector<8x1x8x64xf32>
    %67 = vector.shape_cast %66 : vector<8x1x8x64xf32> to vector<8x8x64xf32>
    %68 = vector.extract_strided_slice %63 {offsets = [0, 1, 0, 0], sizes = [8, 1, 8, 64], strides = [1, 1, 1, 1]} : vector<8x2x8x64xf32> to vector<8x1x8x64xf32>
    %69 = vector.shape_cast %68 : vector<8x1x8x64xf32> to vector<8x8x64xf32>
    %70 = arith.maximumf %67, %69 : vector<8x8x64xf32>
    %71 = vector.extract_strided_slice %65 {offsets = [0, 1, 0, 0], sizes = [8, 1, 8, 64], strides = [1, 1, 1, 1]} : vector<8x2x8x64xf32> to vector<8x1x8x64xf32>
    %72 = vector.shape_cast %71 : vector<8x1x8x64xf32> to vector<8x8x64xf32>
    %73 = arith.maximumf %70, %72 : vector<8x8x64xf32>
    %c0_63 = arith.constant 0 : index
    %c0_64 = arith.constant 0 : index
    %c0_65 = arith.constant 0 : index
    %c0_66 = arith.constant 0 : index
    %74 = vector.load %arg7[%c0_63, %c0_64, %c0_65, %c0_66] : memref<1x8x8x64xf32, #tpu.memory_space<vmem>>, vector<1x8x8x64xf32>
    %75 = vector.shape_cast %74 : vector<1x8x8x64xf32> to vector<8x8x64xf32>
    %76 = vector.shape_cast %73 : vector<8x8x64xf32> to vector<1x8x8x64xf32>
    tpu.vector_store %arg7[%c0_63, %c0_64, %c0_65, %c0_66], %76 {strides = array<i32>} : memref<1x8x8x64xf32, #tpu.memory_space<vmem>>, vector<1x8x8x64xf32>,
    return
  }
  func.func @transform_0(%arg0: i32, %arg1: i32) -> (i32, i32, i32, i32, i32) {
    %c0_i32 = arith.constant 0 : i32
    %c0_i32_0 = arith.constant 0 : i32
    %c0_i32_1 = arith.constant 0 : i32
    %c0_i32_2 = arith.constant 0 : i32
    return %arg0, %arg1, %c0_i32, %c0_i32_0, %c0_i32_1 : i32, i32, i32, i32, i32
  }
  func.func @transform_1(%arg0: i32, %arg1: i32) -> (i32, i32) {
    %c0_i32 = arith.constant 0 : i32
    %c0_i32_0 = arith.constant 0 : i32
    %c0_i32_1 = arith.constant 0 : i32
    return %c0_i32, %c0_i32_0 : i32, i32
  }
  func.func @transform_2(%arg0: i32, %arg1: i32) -> (i32, i32) {
    %c0_i32 = arith.constant 0 : i32
    %c0_i32_0 = arith.constant 0 : i32
    %c0_i32_1 = arith.constant 0 : i32
    return %c0_i32, %c0_i32_0 : i32, i32
  }
  func.func @transform_3(%arg0: i32, %arg1: i32) -> (i32, i32, i32) {
    %c0_i32 = arith.constant 0 : i32
    %c0_i32_0 = arith.constant 0 : i32
    %c0_i32_1 = arith.constant 0 : i32
    %c0_i32_2 = arith.constant 0 : i32
    return %c0_i32, %c0_i32_0, %c0_i32_1 : i32, i32, i32
  }
  func.func @transform_4(%arg0: i32, %arg1: i32) -> (i32, i32) {
    %c0_i32 = arith.constant 0 : i32
    %c0_i32_0 = arith.constant 0 : i32
    %c0_i32_1 = arith.constant 0 : i32
    return %c0_i32, %c0_i32_0 : i32, i32
  }
  func.func @transform_5(%arg0: i32, %arg1: i32) -> (i32, i32, i32, i32) {
    %c0_i32 = arith.constant 0 : i32
    %c0_i32_0 = arith.constant 0 : i32
    %c0_i32_1 = arith.constant 0 : i32
    return %arg0, %arg1, %c0_i32, %c0_i32_0 : i32, i32, i32, i32
  }
}

</mosaic_0001>

<llo_original>
// kernel: tpu_custom_call.1
$region0: #{tpu_custom_call.1}
  #allocation0 [shape = 'u32[]', space=smem, size = 0x4, offset = 0x4, fixed_abs, tag = 'smem constant byte address 0x4 - core index']
  #allocation1 [shape = 'u32[144,128]{1,0:T(1,128)}', space=vmem, size = 0x12000, scoped, tag = 'internal scratch']
  #allocation2 [shape = 'bf16[19,16,192]{2,1,0:T(16,128)(2,1)}', space=vmem, size = 0x26000, scoped, tag = 'scratch operand']
  #allocation3 [shape = 'f32[17,16,64]{2,1,0:T(8,128)}', space=vmem, size = 0x22000, scoped, tag = 'scratch operand']
  %s0 = inlined_call_operand.vmem [shape: bf16[2,1,19,16,27], index: 0, kind: input, shape index: {}]
  %s1 = inlined_call_operand.vmem [shape: bf16[27,64], index: 1, kind: input, shape index: {}]
  %s2 = inlined_call_operand.vmem [shape: f32[1,64], index: 2, kind: input, shape index: {}]
  %s3 = inlined_call_operand.vmem [shape: bf16[3,192,64], index: 3, kind: input, shape index: {}]
  %s4 = inlined_call_operand.vmem [shape: f32[1,64], index: 4, kind: input, shape index: {}]
  %s5 = inlined_call_operand.hbm [shape: f32[2,8,8,64], index: 5, kind: output, shape index: {}]
  %s6 = sld [smem:[#allocation0]]
  $region61: #{tpu_custom_call.1} parent=0
    _
  %s8 = ssub.s32 1, %s6
  %s9 = scalar_select 0, %s8, %s6
  $region1: #{tpu_custom_call.1} parent=0
    #allocation4 [shape = 'u8[65536]{0}', space=vmem, size = 0x10000, scoped, tag = 'output window, operand 0']
    #allocation5 [shape = 's32[2]{0}', space=sflag, size = 0x8, scoped, tag = 'scoped memory for tpu_custom_call.1']
    %10 = vsyncpa [#allocation5], 0
    %s11 = scalar_lea.sflag [#allocation5], 1
    %12 = vsyncpa %s11, 0
    loop: start=0, step=1, limit=4
    $region2: #{tpu_custom_call.1} parent=1 // loop_pre_header
      _
    $region3: #{tpu_custom_call.1} parent=1 // loop_header
      %s14 = sphi 0, %s18
      %p15 = scmp.ge.s32.totalorder %s14, 4
      %s21 = sphi 0, %s33
      %s22 = sphi 0, %s29
      %s23 = sphi 0, %s21
      %s24 = sphi 0, %s22
      %s25 = sphi 0, %s23
      %s26 = sphi 0, %s24
      %s38 = sphi 0, %s40
      %s41 = sphi 0, %s38
      %s42 = sphi 0, %s41
      %s58 = sphi 0, %s42
      %s62 = sphi 0, %s62
      %s64 = sphi 0, %s62
      %s65 = sphi 0, %s64
      %s79 = sphi 0, %s65
      %s83 = sphi 0, %s83
      %s85 = sphi 0, %s83
      %s86 = sphi 0, %s85
      %s100 = sphi 0, %s86
      %s104 = sphi 0, %s104
      %s106 = sphi 0, %s104
      %s107 = sphi 0, %s106
      %s121 = sphi 0, %s107
      %s125 = sphi 0, %s125
      %s127 = sphi 0, %s125
      %s128 = sphi 0, %s127
      %s142 = sphi 0, %s128
      %s150 = sphi 0, %s152
      %s153 = sphi 0, %s150
      %s154 = sphi 0, %s153
      %s170 = sphi 0, %s154
    $region4: #{tpu_custom_call.1} parent=1 // loop_header_branch
      %17 = sbr.rel (%p15) target = $region8
    $region5: #{tpu_custom_call.1} parent=1 // loop_body
      %s19 = ssub.s32 %s14, 1
      %s20 = ssub.s32 %s14, 2
      %s27 = sadd.s32 1, %s22
      %p28 = scmp.ge.s32.totalorder %s27, 1
      %s29 = scalar_select %p28, 0, %s27
      %s30 = sadd.s32 1, %s21
      %s31 = scalar_select %p28, %s30, %s21
      %p32 = scmp.ge.s32.totalorder %s31, 2
      %s33 = scalar_select %p32, 0, %s31
      %s34 = ssub.s32 %s21, %s33
      %s35 = ssub.s32 %s22, %s29
      %s36 = sor.u32 %s34, %s35
      %p37 = scmp.eq.s32.totalorder %s36, 0
      %s39 = sadd.s32 %s38, 1
      %s40 = scalar_select %p37, %s38, %s39
      %p43 = pneg %p37
      %p44 = scmp.eq.s32.totalorder %s14, 1
      %p45 = por %p43, %p44
      %p46 = scmp.ne.s32.totalorder %s38, %s41
      %p47 = scmp.eq.s32.totalorder %s14, 0
      %p48 = por %p46, %p47
      %p49 = scmp.ne.s32.totalorder %s38, %s41
      %p50 = scmp.eq.s32.totalorder %s19, 1
      %p51 = por %p49, %p50
      %p52 = scmp.ne.s32.totalorder %s41, %s42
      %p53 = scmp.eq.s32.totalorder %s19, 0
      %p54 = por %p52, %p53
      %p55 = scmp.ne.s32.totalorder %s41, %s42
      %p56 = scmp.eq.s32.totalorder %s20, 1
      %p57 = por %p55, %p56
      %p59 = scmp.ne.s32.totalorder %s42, %s58
      %p60 = scmp.eq.s32.totalorder %s20, 0
      %p61 = por %p59, %p60
      %s63 = sadd.s32 %s62, 1
      %p66 = scmp.eq.s32.totalorder %s14, 1
      %p67 = scmp.ne.s32.totalorder %s62, %s64
      %p68 = scmp.eq.s32.totalorder %s14, 0
      %p69 = por %p67, %p68
      %p70 = scmp.ne.s32.totalorder %s62, %s64
      %p71 = scmp.eq.s32.totalorder %s19, 1
      %p72 = por %p70, %p71
      %p73 = scmp.ne.s32.totalorder %s64, %s65
      %p74 = scmp.eq.s32.totalorder %s19, 0
      %p75 = por %p73, %p74
      %p76 = scmp.ne.s32.totalorder %s64, %s65
      %p77 = scmp.eq.s32.totalorder %s20, 1
      %p78 = por %p76, %p77
      %p80 = scmp.ne.s32.totalorder %s65, %s79
      %p81 = scmp.eq.s32.totalorder %s20, 0
      %p82 = por %p80, %p81
      %s84 = sadd.s32 %s83, 1
      %p87 = scmp.eq.s32.totalorder %s14, 1
      %p88 = scmp.ne.s32.totalorder %s83, %s85
      %p89 = scmp.eq.s32.totalorder %s14, 0
      %p90 = por %p88, %p89
      %p91 = scmp.ne.s32.totalorder %s83, %s85
      %p92 = scmp.eq.s32.totalorder %s19, 1
      %p93 = por %p91, %p92
      %p94 = scmp.ne.s32.totalorder %s85, %s86
      %p95 = scmp.eq.s32.totalorder %s19, 0
      %p96 = por %p94, %p95
      %p97 = scmp.ne.s32.totalorder %s85, %s86
      %p98 = scmp.eq.s32.totalorder %s20, 1
      %p99 = por %p97, %p98
      %p101 = scmp.ne.s32.totalorder %s86, %s100
      %p102 = scmp.eq.s32.totalorder %s20, 0
      %p103 = por %p101, %p102
      %s105 = sadd.s32 %s104, 1
      %p108 = scmp.eq.s32.totalorder %s14, 1
      %p109 = scmp.ne.s32.totalorder %s104, %s106
      %p110 = scmp.eq.s32.totalorder %s14, 0
      %p111 = por %p109, %p110
      %p112 = scmp.ne.s32.totalorder %s104, %s106
      %p113 = scmp.eq.s32.totalorder %s19, 1
      %p114 = por %p112, %p113
      %p115 = scmp.ne.s32.totalorder %s106, %s107
      %p116 = scmp.eq.s32.totalorder %s19, 0
      %p117 = por %p115, %p116
      %p118 = scmp.ne.s32.totalorder %s106, %s107
      %p119 = scmp.eq.s32.totalorder %s20, 1
      %p120 = por %p118, %p119
      %p122 = scmp.ne.s32.totalorder %s107, %s121
      %p123 = scmp.eq.s32.totalorder %s20, 0
      %p124 = por %p122, %p123
      %s126 = sadd.s32 %s125, 1
      %p129 = scmp.eq.s32.totalorder %s14, 1
      %p130 = scmp.ne.s32.totalorder %s125, %s127
      %p131 = scmp.eq.s32.totalorder %s14, 0
      %p132 = por %p130, %p131
      %p133 = scmp.ne.s32.totalorder %s125, %s127
      %p134 = scmp.eq.s32.totalorder %s19, 1
      %p135 = por %p133, %p134
      %p136 = scmp.ne.s32.totalorder %s127, %s128
      %p137 = scmp.eq.s32.totalorder %s19, 0
      %p138 = por %p136, %p137
      %p139 = scmp.ne.s32.totalorder %s127, %s128
      %p140 = scmp.eq.s32.totalorder %s20, 1
      %p141 = por %p139, %p140
      %p143 = scmp.ne.s32.totalorder %s128, %s142
      %p144 = scmp.eq.s32.totalorder %s20, 0
      %p145 = por %p143, %p144
      %s146 = ssub.s32 %s21, %s33
      %s147 = ssub.s32 %s22, %s29
      %s148 = sor.u32 %s146, %s147
      %p149 = scmp.eq.s32.totalorder %s148, 0
      %s151 = sadd.s32 %s150, 1
      %s152 = scalar_select %p149, %s150, %s151
      %p155 = pneg %p149
      %p156 = scmp.eq.s32.totalorder %s14, 1
      %p157 = por %p155, %p156
      %p158 = scmp.ne.s32.totalorder %s150, %s153
      %p159 = scmp.eq.s32.totalorder %s14, 0
      %p160 = por %p158, %p159
      %p161 = scmp.ne.s32.totalorder %s150, %s153
      %p162 = scmp.eq.s32.totalorder %s19, 1
      %p163 = por %p161, %p162
      %p164 = scmp.ne.s32.totalorder %s153, %s154
      %p165 = scmp.eq.s32.totalorder %s19, 0
      %p166 = por %p164, %p165
      %p167 = scmp.ne.s32.totalorder %s153, %s154
      %p168 = scmp.eq.s32.totalorder %s20, 1
      %p169 = por %p167, %p168
      %p171 = scmp.ne.s32.totalorder %s154, %s170
      %p172 = scmp.eq.s32.totalorder %s20, 0
      %p173 = por %p171, %p172
      %p174 = scmp.le.s32.totalorder 1, %s14
      %p175 = scmp.lt.s32.totalorder %s14, 3
      %p176 = pnand %p174, %p175
      %p177 = pneg %p176
      // Predicated region
      $region9: #{tpu_custom_call.1} parent=5 // pred_check
        _
      $region10: #{tpu_custom_call.1} parent=5 // pred_check_branch
        %179 = sbr.rel (%p176) target = $region12
      $region11: #{tpu_custom_call.1} parent=5 // pred_region
        %s180 = ssub.s32 %s14, 1
        // Predicated region
        $region13: #{tpu_custom_call.1} parent=11 // pred_check
          %p181 = pneg %p75
        $region14: #{tpu_custom_call.1} parent=11 // pred_check_branch
          %183 = sbr.rel (%p181) target = $region16
        $region15: #{tpu_custom_call.1} parent=11 // pred_region
          _
        $region16: #{tpu_custom_call.1} parent=11 // pred_fallthru
          _
        // Predicated region
        $region17: #{tpu_custom_call.1} parent=11 // pred_check
          %p184 = pneg %p96
        $region18: #{tpu_custom_call.1} parent=11 // pred_check_branch
          %186 = sbr.rel (%p184) target = $region20
        $region19: #{tpu_custom_call.1} parent=11 // pred_region
          _
        $region20: #{tpu_custom_call.1} parent=11 // pred_fallthru
          _
        // Predicated region
        $region21: #{tpu_custom_call.1} parent=11 // pred_check
          %p187 = pneg %p117
        $region22: #{tpu_custom_call.1} parent=11 // pred_check_branch
          %189 = sbr.rel (%p187) target = $region24
        $region23: #{tpu_custom_call.1} parent=11 // pred_region
          _
        $region24: #{tpu_custom_call.1} parent=11 // pred_fallthru
          _
        // Predicated region
        $region25: #{tpu_custom_call.1} parent=11 // pred_check
          %p190 = pneg %p138
        $region26: #{tpu_custom_call.1} parent=11 // pred_check_branch
          %192 = sbr.rel (%p190) target = $region28
        $region27: #{tpu_custom_call.1} parent=11 // pred_region
          _
        $region28: #{tpu_custom_call.1} parent=11 // pred_fallthru
          _
      $region12: #{tpu_custom_call.1} parent=5 // pred_fallthru
        _
      %p193 = scmp.lt.s32.totalorder %s14, 2
      // Predicated region
      $region29: #{tpu_custom_call.1} parent=5 // pred_check
        %p194 = pneg %p193
      $region30: #{tpu_custom_call.1} parent=5 // pred_check_branch
        %196 = sbr.rel (%p194) target = $region32
      $region31: #{tpu_custom_call.1} parent=5 // pred_region
        // Predicated region
        $region33: #{tpu_custom_call.1} parent=31 // pred_check
          %p197 = pneg %p48
        $region34: #{tpu_custom_call.1} parent=31 // pred_check_branch
          %199 = sbr.rel (%p197) target = $region36
        $region35: #{tpu_custom_call.1} parent=31 // pred_region
          %p200 = scmp.lt.s32.totalorder %s21, 1
          %s201 = scalar_select %p200, %s21, 1
          %p202 = scmp.lt.s32.totalorder %s22, 0
          %s203 = scalar_select %p202, %s22, 0
          %s204 = smul.addr %s203, 38
          %s205 = smul.addr %s201, 38
          %s206 = sadd.s32 %s204, %s205
          %s207 = smul.addr %s206, 4
          %s208 = scalar_lea.vmem %s0, %s207
        $region36: #{tpu_custom_call.1} parent=31 // pred_fallthru
          _
      $region32: #{tpu_custom_call.1} parent=5 // pred_fallthru
        _
      %p209 = scmp.le.s32.totalorder 1, %s14
      %p210 = scmp.lt.s32.totalorder %s14, 3
      %p211 = pnand %p209, %p210
      %p212 = pneg %p211
      // Predicated region
      $region37: #{tpu_custom_call.1} parent=5 // pred_check
        _
      $region38: #{tpu_custom_call.1} parent=5 // pred_check_branch
        %214 = sbr.rel (%p211) target = $region40
      $region39: #{tpu_custom_call.1} parent=5 // pred_region
        %s215 = ssub.s32 %s14, 1
        %p216 = scmp.lt.s32.totalorder %s23, 1
        %s217 = scalar_select %p216, %s23, 1
        %p218 = scmp.lt.s32.totalorder %s24, 0
        %s219 = scalar_select %p218, %s24, 0
        %s220 = smul.addr %s219, 38
        %s221 = smul.addr %s217, 38
        %s222 = sadd.s32 %s220, %s221
        %s223 = smul.addr %s222, 4
        %s224 = scalar_lea.vmem %s0, %s223
        %p225 = pneg %p54
        %p226 = pneg %p51
        %p227 = pneg %p75
        %p228 = pneg %p72
        %p229 = pneg %p96
        %p230 = pneg %p93
        %p231 = pneg %p117
        %p232 = pneg %p114
        %p233 = pneg %p138
        %p234 = pneg %p135
        %p235 = pneg %p166
        %p236 = pneg %p163
        %s237 = sand.u32 %s153, 1
        %s238 = scalar_lea.sflag [#allocation5], %s237
        %s239 = sand.u32 %s153, 1
        %s240 = smul.addr %s239, 64
        %s241 = scalar_lea.vmem [#allocation4], %s240
        %p242 = scmp.lt.s32.totalorder %s23, 1
        %s243 = scalar_select %p242, %s23, 1
        %p244 = scmp.lt.s32.totalorder %s24, 0
        %s245 = scalar_select %p244, %s24, 0
        %s246 = smul.addr %s245, 38
        %s247 = smul.addr %s243, 38
        %s248 = sadd.s32 %s246, %s247
        %s249 = smul.addr %s248, 4
        %s250 = scalar_lea.vmem %s0, %s249
        %s251 = smul.u32 8, %s24
        %v253 = vld [vmem:[%s250] sm:$0xf]
        %v254 = vld [vmem:[%s250 + $0x4] sm:$0xf]
        %v255 = vld [vmem:[%s250 + $0x8] sm:$0xf]
        %v256 = vld [vmem:[%s250 + $0xc] sm:$0xf]
        %v257 = vld [vmem:[%s250 + $0x10] sm:$0xf]
        %v258 = vld [vmem:[%s250 + $0x14] sm:$0xf]
        %v259 = vld [vmem:[%s250 + $0x18] sm:$0xf]
        %v260 = vld [vmem:[%s250 + $0x1c] sm:$0xf]
        %v261 = vld [vmem:[%s250 + $0x20] sm:$0xf]
        %v262 = vld [vmem:[%s250 + $0x24] sm:$0xf]
        %v263 = vld [vmem:[%s250 + $0x28] sm:$0xf]
        %v264 = vld [vmem:[%s250 + $0x2c] sm:$0xf]
        %v265 = vld [vmem:[%s250 + $0x30] sm:$0xf]
        %v266 = vld [vmem:[%s250 + $0x34] sm:$0xf]
        %v267 = vld [vmem:[%s250 + $0x38] sm:$0xf]
        %v268 = vld [vmem:[%s250 + $0x3c] sm:$0xf]
        %v269 = vld [vmem:[%s250 + $0x40] sm:$0xf]
        %v270 = vld [vmem:[%s250 + $0x44] sm:$0xf]
        %v271 = vld [vmem:[%s250 + $0x48] sm:$0xf]
        %v272 = vld [vmem:[%s250 + $0x4c] sm:$0xf]
        %v273 = vld [vmem:[%s250 + $0x50] sm:$0xf]
        %v274 = vld [vmem:[%s250 + $0x54] sm:$0xf]
        %v275 = vld [vmem:[%s250 + $0x58] sm:$0xf]
        %v276 = vld [vmem:[%s250 + $0x5c] sm:$0xf]
        %v277 = vld [vmem:[%s250 + $0x60] sm:$0xf]
        %v278 = vld [vmem:[%s250 + $0x64] sm:$0xf]
        %v279 = vld [vmem:[%s250 + $0x68] sm:$0xf]
        %v280 = vld [vmem:[%s250 + $0x6c] sm:$0xf]
        %v281 = vld [vmem:[%s250 + $0x70] sm:$0xf]
        %v282 = vld [vmem:[%s250 + $0x74] sm:$0xf]
        %v283 = vld [vmem:[%s250 + $0x78] sm:$0xf]
        %v284 = vld [vmem:[%s250 + $0x7c] sm:$0xf]
        %v285 = vld [vmem:[%s250 + $0x80] sm:$0xf]
        %v286 = vld [vmem:[%s250 + $0x84] sm:$0xf]
        %v287 = vld [vmem:[%s250 + $0x88] sm:$0xf]
        %v288 = vld [vmem:[%s250 + $0x8c] sm:$0xf]
        %v289 = vld [vmem:[%s250 + $0x90] sm:$0xf]
        %v290 = vld [vmem:[%s250 + $0x94] sm:$0xf]
        %v291 = vld [vmem:[%s1] sm:$0xf]
        %v292 = vld [vmem:[%s1 + $0x4] sm:$0xf]
        %v293 = vld [vmem:[%s1 + $0x8] sm:$0xf]
        %v294 = vld [vmem:[%s1 + $0xc] sm:$0x3]
        %v295 = vld [vmem:[%s2] sm:$0x1]
        %v297 = vlaneseq
        %v298 = vshrl.u32 %v297, 7
        %v299 = vsub.s32 0, %v298
        %v300 = vrot.slane %v295, %v299
        %v340 = vunpack.c.l.b16 %v253
        %v341 = vunpack.c.l.b16 %v254
        %v342 = vunpack.c.l.b16 %v255
        %v343 = vunpack.c.l.b16 %v256
        %v344 = vunpack.c.l.b16 %v257
        %v345 = vunpack.c.l.b16 %v258
        %v346 = vunpack.c.l.b16 %v259
        %v347 = vunpack.c.l.b16 %v260
        %v348 = vunpack.c.l.b16 %v261
        %v349 = vunpack.c.l.b16 %v262
        %v350 = vunpack.c.l.b16 %v263
        %v351 = vunpack.c.l.b16 %v264
        %v352 = vunpack.c.l.b16 %v265
        %v353 = vunpack.c.l.b16 %v266
        %v354 = vunpack.c.l.b16 %v267
        %v355 = vunpack.c.l.b16 %v268
        %v356 = vunpack.c.l.b16 %v269
        %v357 = vunpack.c.l.b16 %v270
        %v358 = vunpack.c.l.b16 %v271
        %v359 = vunpack.c.l.b16 %v272
        %v360 = vunpack.c.l.b16 %v273
        %v361 = vunpack.c.l.b16 %v274
        %v362 = vunpack.c.l.b16 %v275
        %v363 = vunpack.c.l.b16 %v276
        %v364 = vunpack.c.l.b16 %v277
        %v365 = vunpack.c.l.b16 %v278
        %v366 = vunpack.c.l.b16 %v279
        %v367 = vunpack.c.l.b16 %v280
        %v368 = vunpack.c.l.b16 %v281
        %v369 = vunpack.c.l.b16 %v282
        %v370 = vunpack.c.l.b16 %v283
        %v371 = vunpack.c.l.b16 %v284
        %v372 = vunpack.c.l.b16 %v285
        %v373 = vunpack.c.l.b16 %v286
        %v374 = vunpack.c.l.b16 %v287
        %v375 = vunpack.c.l.b16 %v288
        %v376 = vunpack.c.l.b16 %v289
        %v377 = vunpack.c.l.b16 %v290
        %v378 = vpack.c.b16 %v341, %v340
        %v379 = vpack.c.b16 %v343, %v342
        %v380 = vpack.c.b16 %v345, %v344
        %v381 = vpack.c.b16 %v347, %v346
        %v382 = vpack.c.b16 %v349, %v348
        %v383 = vpack.c.b16 %v351, %v350
        %v384 = vpack.c.b16 %v353, %v352
        %v385 = vpack.c.b16 %v355, %v354
        %v386 = vpack.c.b16 %v357, %v356
        %v387 = vpack.c.b16 %v359, %v358
        %v388 = vpack.c.b16 %v361, %v360
        %v389 = vpack.c.b16 %v363, %v362
        %v390 = vpack.c.b16 %v365, %v364
        %v391 = vpack.c.b16 %v367, %v366
        %v392 = vpack.c.b16 %v369, %v368
        %v393 = vpack.c.b16 %v371, %v370
        %v394 = vpack.c.b16 %v373, %v372
        %v395 = vpack.c.b16 %v375, %v374
        %v396 = vpack.c.b16 %v377, %v376
        %v401 = vunpack.c.l.b16 %v291
        %v402 = vunpack.c.l.b16 %v292
        %v403 = vunpack.c.l.b16 %v293
        %v404 = vunpack.c.l.b16 %v294
        %v405 = vpack.c.b16 %v402, %v401
        %v406 = vpack.c.b16 %v404, %v403
        %vm408 = vcmask 220160
        %v410 = vsel %vm408, %v378, 0
        %v413 = vsel %vm408, %v379, 0
        %v416 = vsel %vm408, %v380, 0
        %v419 = vsel %vm408, %v381, 0
        %v422 = vsel %vm408, %v382, 0
        %v425 = vsel %vm408, %v383, 0
        %v428 = vsel %vm408, %v384, 0
        %v431 = vsel %vm408, %v385, 0
        %v434 = vsel %vm408, %v386, 0
        %v437 = vsel %vm408, %v387, 0
        %v440 = vsel %vm408, %v388, 0
        %v443 = vsel %vm408, %v389, 0
        %v446 = vsel %vm408, %v390, 0
        %v449 = vsel %vm408, %v391, 0
        %v452 = vsel %vm408, %v392, 0
        %v455 = vsel %vm408, %v393, 0
        %v458 = vsel %vm408, %v394, 0
        %v461 = vsel %vm408, %v395, 0
        %v464 = vsel %vm408, %v396, 0
        %vm466 = vcmask 1044480
        %vm467 = vcmask 1045504
        %v468 = vsel %vm466, 4294967295, 65535
        %v469 = vsel %vm467, %v468, 0
        %v471 = vand.u32 %v406, %v469
        %473 = vmatprep.subr.bf16.mxu0 0
        %474 = vmatpush1.bf16.msra.mxu0 %v405
        %475 = vmatprep.subr.bf16.mxu0 0
        %476 = vmatpush1.bf16.msra.mxu0 %v471
        %477 = vmatprep.subr.bf16.mxu0 0
        %478 = vmatpush1.bf16.msra.mxu0 0
        %479 = vmatprep.subr.bf16.mxu0 0
        %480 = vmatpush1.bf16.msra.mxu0 0
        %481 = vmatprep.subr.bf16.mxu0 0
        %482 = vmatpush1.bf16.msra.mxu0 0
        %483 = vmatprep.subr.bf16.mxu0 0
        %484 = vmatpush1.bf16.msra.mxu0 0
        %485 = vmatprep.subr.bf16.mxu0 0
        %486 = vmatpush1.bf16.msra.mxu0 0
        %487 = vmatprep.subr.bf16.mxu0 0
        %488 = vmatpush1.bf16.msra.mxu0 0
        %489 = vmatprep.subr.bf16.mxu0 0
        %490 = vmatpush1.bf16.msra.mxu0 0
        %491 = vmatprep.subr.bf16.mxu0 0
        %492 = vmatpush1.bf16.msra.mxu0 0
        %493 = vmatprep.subr.bf16.mxu0 0
        %494 = vmatpush1.bf16.msra.mxu0 0
        %495 = vmatprep.subr.bf16.mxu0 0
        %496 = vmatpush1.bf16.msra.mxu0 0
        %497 = vmatprep.subr.bf16.mxu0 0
        %498 = vmatpush1.bf16.msra.mxu0 0
        %499 = vmatprep.subr.bf16.mxu0 0
        %500 = vmatpush1.bf16.msra.mxu0 0
        %501 = vmatprep.subr.bf16.mxu0 0
        %502 = vmatpush1.bf16.msra.mxu0 0
        %503 = vmatprep.subr.bf16.mxu0 0
        %504 = vmatpush1.bf16.msra.mxu0 0
        %505 = vmatprep.mubr.bf16.mxu0 0
        %506 = vmatmul.mubr.bf16.gmra.mrb[0].mxu0 %v410
        %v507 = vpop.f32.mrb[0].mxu0
        %v508 = vadd.f32 %v300, %v507
        %v509 = vpop.f32.mrb[0].mxu0
        %v510 = vpop.f32.mrb[0].mxu0
        %v511 = vadd.f32 %v300, %v510
        %v512 = vpop.f32.mrb[0].mxu0
        %513 = vmatprep.mubr.bf16.mxu0 0
        %514 = vmatmul.mubr.bf16.gmra.mrb[0].mxu0 %v413
        %v515 = vpop.f32.mrb[0].mxu0
        %v516 = vadd.f32 %v300, %v515
        %v517 = vpop.f32.mrb[0].mxu0
        %v518 = vpop.f32.mrb[0].mxu0
        %v519 = vadd.f32 %v300, %v518
        %v520 = vpop.f32.mrb[0].mxu0
        %521 = vmatprep.mubr.bf16.mxu0 0
        %522 = vmatmul.mubr.bf16.gmra.mrb[0].mxu0 %v416
        %v523 = vpop.f32.mrb[0].mxu0
        %v524 = vadd.f32 %v300, %v523
        %v525 = vpop.f32.mrb[0].mxu0
        %v526 = vpop.f32.mrb[0].mxu0
        %v527 = vadd.f32 %v300, %v526
        %v528 = vpop.f32.mrb[0].mxu0
        %529 = vmatprep.mubr.bf16.mxu0 0
        %530 = vmatmul.mubr.bf16.gmra.mrb[0].mxu0 %v419
        %v531 = vpop.f32.mrb[0].mxu0
        %v532 = vadd.f32 %v300, %v531
        %v533 = vpop.f32.mrb[0].mxu0
        %v534 = vpop.f32.mrb[0].mxu0
        %v535 = vadd.f32 %v300, %v534
        %v536 = vpop.f32.mrb[0].mxu0
        %537 = vmatprep.mubr.bf16.mxu0 0
        %538 = vmatmul.mubr.bf16.gmra.mrb[0].mxu0 %v422
        %v539 = vpop.f32.mrb[0].mxu0
        %v540 = vadd.f32 %v300, %v539
        %v541 = vpop.f32.mrb[0].mxu0
        %v542 = vpop.f32.mrb[0].mxu0
        %v543 = vadd.f32 %v300, %v542
        %v544 = vpop.f32.mrb[0].mxu0
        %545 = vmatprep.mubr.bf16.mxu0 0
        %546 = vmatmul.mubr.bf16.gmra.mrb[0].mxu0 %v425
        %v547 = vpop.f32.mrb[0].mxu0
        %v548 = vadd.f32 %v300, %v547
        %v549 = vpop.f32.mrb[0].mxu0
        %v550 = vpop.f32.mrb[0].mxu0
        %v551 = vadd.f32 %v300, %v550
        %v552 = vpop.f32.mrb[0].mxu0
        %553 = vmatprep.mubr.bf16.mxu0 0
        %554 = vmatmul.mubr.bf16.gmra.mrb[0].mxu0 %v428
        %v555 = vpop.f32.mrb[0].mxu0
        %v556 = vadd.f32 %v300, %v555
        %v557 = vpop.f32.mrb[0].mxu0
        %v558 = vpop.f32.mrb[0].mxu0
        %v559 = vadd.f32 %v300, %v558
        %v560 = vpop.f32.mrb[0].mxu0
        %561 = vmatprep.mubr.bf16.mxu0 0
        %562 = vmatmul.mubr.bf16.gmra.mrb[0].mxu0 %v431
        %v563 = vpop.f32.mrb[0].mxu0
        %v564 = vadd.f32 %v300, %v563
        %v565 = vpop.f32.mrb[0].mxu0
        %v566 = vpop.f32.mrb[0].mxu0
        %v567 = vadd.f32 %v300, %v566
        %v568 = vpop.f32.mrb[0].mxu0
        %569 = vmatprep.mubr.bf16.mxu0 0
        %570 = vmatmul.mubr.bf16.gmra.mrb[0].mxu0 %v434
        %v571 = vpop.f32.mrb[0].mxu0
        %v572 = vadd.f32 %v300, %v571
        %v573 = vpop.f32.mrb[0].mxu0
        %v574 = vpop.f32.mrb[0].mxu0
        %v575 = vadd.f32 %v300, %v574
        %v576 = vpop.f32.mrb[0].mxu0
        %577 = vmatprep.mubr.bf16.mxu0 0
        %578 = vmatmul.mubr.bf16.gmra.mrb[0].mxu0 %v437
        %v579 = vpop.f32.mrb[0].mxu0
        %v580 = vadd.f32 %v300, %v579
        %v581 = vpop.f32.mrb[0].mxu0
        %v582 = vpop.f32.mrb[0].mxu0
        %v583 = vadd.f32 %v300, %v582
        %v584 = vpop.f32.mrb[0].mxu0
        %585 = vmatprep.mubr.bf16.mxu0 0
        %586 = vmatmul.mubr.bf16.gmra.mrb[0].mxu0 %v440
        %v587 = vpop.f32.mrb[0].mxu0
        %v588 = vadd.f32 %v300, %v587
        %v589 = vpop.f32.mrb[0].mxu0
        %v590 = vpop.f32.mrb[0].mxu0
        %v591 = vadd.f32 %v300, %v590
        %v592 = vpop.f32.mrb[0].mxu0
        %593 = vmatprep.mubr.bf16.mxu0 0
        %594 = vmatmul.mubr.bf16.gmra.mrb[0].mxu0 %v443
        %v595 = vpop.f32.mrb[0].mxu0
        %v596 = vadd.f32 %v300, %v595
        %v597 = vpop.f32.mrb[0].mxu0
        %v598 = vpop.f32.mrb[0].mxu0
        %v599 = vadd.f32 %v300, %v598
        %v600 = vpop.f32.mrb[0].mxu0
        %601 = vmatprep.mubr.bf16.mxu0 0
        %602 = vmatmul.mubr.bf16.gmra.mrb[0].mxu0 %v446
        %v603 = vpop.f32.mrb[0].mxu0
        %v604 = vadd.f32 %v300, %v603
        %v605 = vpop.f32.mrb[0].mxu0
        %v606 = vpop.f32.mrb[0].mxu0
        %v607 = vadd.f32 %v300, %v606
        %v608 = vpop.f32.mrb[0].mxu0
        %609 = vmatprep.mubr.bf16.mxu0 0
        %610 = vmatmul.mubr.bf16.gmra.mrb[0].mxu0 %v449
        %v611 = vpop.f32.mrb[0].mxu0
        %v612 = vadd.f32 %v300, %v611
        %v613 = vpop.f32.mrb[0].mxu0
        %v614 = vpop.f32.mrb[0].mxu0
        %v615 = vadd.f32 %v300, %v614
        %v616 = vpop.f32.mrb[0].mxu0
        %617 = vmatprep.mubr.bf16.mxu0 0
        %618 = vmatmul.mubr.bf16.gmra.mrb[0].mxu0 %v452
        %v619 = vpop.f32.mrb[0].mxu0
        %v620 = vadd.f32 %v300, %v619
        %v621 = vpop.f32.mrb[0].mxu0
        %v622 = vpop.f32.mrb[0].mxu0
        %v623 = vadd.f32 %v300, %v622
        %v624 = vpop.f32.mrb[0].mxu0
        %625 = vmatprep.mubr.bf16.mxu0 0
        %626 = vmatmul.mubr.bf16.gmra.mrb[0].mxu0 %v455
        %v627 = vpop.f32.mrb[0].mxu0
        %v628 = vadd.f32 %v300, %v627
        %v629 = vpop.f32.mrb[0].mxu0
        %v630 = vpop.f32.mrb[0].mxu0
        %v631 = vadd.f32 %v300, %v630
        %v632 = vpop.f32.mrb[0].mxu0
        %633 = vmatprep.mubr.bf16.mxu0 0
        %634 = vmatmul.mubr.bf16.gmra.mrb[0].mxu0 %v458
        %v635 = vpop.f32.mrb[0].mxu0
        %v636 = vadd.f32 %v300, %v635
        %v637 = vpop.f32.mrb[0].mxu0
        %v638 = vpop.f32.mrb[0].mxu0
        %v639 = vadd.f32 %v300, %v638
        %v640 = vpop.f32.mrb[0].mxu0
        %641 = vmatprep.mubr.bf16.mxu0 0
        %642 = vmatmul.mubr.bf16.gmra.mrb[0].mxu0 %v461
        %v643 = vpop.f32.mrb[0].mxu0
        %v644 = vadd.f32 %v300, %v643
        %v645 = vpop.f32.mrb[0].mxu0
        %v646 = vpop.f32.mrb[0].mxu0
        %v647 = vadd.f32 %v300, %v646
        %v648 = vpop.f32.mrb[0].mxu0
        %649 = vmatprep.mubr.bf16.mxu0 0
        %650 = vmatmul.mubr.bf16.gmra.mrb[0].mxu0 %v464
        %v651 = vpop.f32.mrb[0].mxu0
        %v652 = vadd.f32 %v300, %v651
        %v653 = vpop.f32.mrb[0].mxu0
        %v654 = vpop.f32.mrb[0].mxu0
        %v655 = vadd.f32 %v300, %v654
        %v656 = vpop.f32.mrb[0].mxu0
        %657 = vdwg.mxu0
        %v658 = vmax.f32 %v508, 0.0
        %v659 = vmax.f32 %v511, 0.0
        %v660 = vmax.f32 %v516, 0.0
        %v661 = vmax.f32 %v519, 0.0
        %v662 = vmax.f32 %v524, 0.0
        %v663 = vmax.f32 %v527, 0.0
        %v664 = vmax.f32 %v532, 0.0
        %v665 = vmax.f32 %v535, 0.0
        %v666 = vmax.f32 %v540, 0.0
        %v667 = vmax.f32 %v543, 0.0
        %v668 = vmax.f32 %v548, 0.0
        %v669 = vmax.f32 %v551, 0.0
        %v670 = vmax.f32 %v556, 0.0
        %v671 = vmax.f32 %v559, 0.0
        %v672 = vmax.f32 %v564, 0.0
        %v673 = vmax.f32 %v567, 0.0
        %v674 = vmax.f32 %v572, 0.0
        %v675 = vmax.f32 %v575, 0.0
        %v676 = vmax.f32 %v580, 0.0
        %v677 = vmax.f32 %v583, 0.0
        %v678 = vmax.f32 %v588, 0.0
        %v679 = vmax.f32 %v591, 0.0
        %v680 = vmax.f32 %v596, 0.0
        %v681 = vmax.f32 %v599, 0.0
        %v682 = vmax.f32 %v604, 0.0
        %v683 = vmax.f32 %v607, 0.0
        %v684 = vmax.f32 %v612, 0.0
        %v685 = vmax.f32 %v615, 0.0
        %v686 = vmax.f32 %v620, 0.0
        %v687 = vmax.f32 %v623, 0.0
        %v688 = vmax.f32 %v628, 0.0
        %v689 = vmax.f32 %v631, 0.0
        %v690 = vmax.f32 %v636, 0.0
        %v691 = vmax.f32 %v639, 0.0
        %v692 = vmax.f32 %v644, 0.0
        %v693 = vmax.f32 %v647, 0.0
        %v694 = vmax.f32 %v652, 0.0
        %v695 = vmax.f32 %v655, 0.0
        %v696 = vpack.c.bf16 %v659, %v658
        %v697 = vpack.c.bf16 %v661, %v660
        %v698 = vpack.c.bf16 %v663, %v662
        %v699 = vpack.c.bf16 %v665, %v664
        %v700 = vpack.c.bf16 %v667, %v666
        %v701 = vpack.c.bf16 %v669, %v668
        %v702 = vpack.c.bf16 %v671, %v670
        %v703 = vpack.c.bf16 %v673, %v672
        %v704 = vpack.c.bf16 %v675, %v674
        %v705 = vpack.c.bf16 %v677, %v676
        %v706 = vpack.c.bf16 %v679, %v678
        %v707 = vpack.c.bf16 %v681, %v680
        %v708 = vpack.c.bf16 %v683, %v682
        %v709 = vpack.c.bf16 %v685, %v684
        %v710 = vpack.c.bf16 %v687, %v686
        %v711 = vpack.c.bf16 %v689, %v688
        %v712 = vpack.c.bf16 %v691, %v690
        %v713 = vpack.c.bf16 %v693, %v692
        %v714 = vpack.c.bf16 %v695, %v694
        %734 = vrot.lane.b32.xlu0 %v696, 64
        %v735 = vpop.permute.xlu0 %734
        %736 = vrot.lane.b32.xlu0 %v697, 64
        %v737 = vpop.permute.xlu0 %736
        %738 = vrot.lane.b32.xlu0 %v698, 64
        %v739 = vpop.permute.xlu0 %738
        %740 = vrot.lane.b32.xlu0 %v699, 64
        %v741 = vpop.permute.xlu0 %740
        %742 = vrot.lane.b32.xlu0 %v700, 64
        %v743 = vpop.permute.xlu0 %742
        %744 = vrot.lane.b32.xlu0 %v701, 64
        %v745 = vpop.permute.xlu0 %744
        %746 = vrot.lane.b32.xlu0 %v702, 64
        %v747 = vpop.permute.xlu0 %746
        %748 = vrot.lane.b32.xlu0 %v703, 64
        %v749 = vpop.permute.xlu0 %748
        %750 = vrot.lane.b32.xlu0 %v704, 64
        %v751 = vpop.permute.xlu0 %750
        %752 = vrot.lane.b32.xlu0 %v705, 64
        %v753 = vpop.permute.xlu0 %752
        %754 = vrot.lane.b32.xlu0 %v706, 64
        %v755 = vpop.permute.xlu0 %754
        %756 = vrot.lane.b32.xlu0 %v707, 64
        %v757 = vpop.permute.xlu0 %756
        %758 = vrot.lane.b32.xlu0 %v708, 64
        %v759 = vpop.permute.xlu0 %758
        %760 = vrot.lane.b32.xlu0 %v709, 64
        %v761 = vpop.permute.xlu0 %760
        %762 = vrot.lane.b32.xlu0 %v710, 64
        %v763 = vpop.permute.xlu0 %762
        %764 = vrot.lane.b32.xlu0 %v711, 64
        %v765 = vpop.permute.xlu0 %764
        %766 = vrot.lane.b32.xlu0 %v712, 64
        %v767 = vpop.permute.xlu0 %766
        %768 = vrot.lane.b32.xlu0 %v713, 64
        %v769 = vpop.permute.xlu0 %768
        %770 = vrot.lane.b32.xlu0 %v714, 64
        %v771 = vpop.permute.xlu0 %770
        %vm791 = vcmask 1048064
        %792 = vst.msk [vmem:[#allocation2] sm:$0xff] %vm791, %v735
        %793 = vst.msk [vmem:[#allocation2 + $0x10] sm:$0xff] %vm791, %v737
        %794 = vst.msk [vmem:[#allocation2 + $0x20] sm:$0xff] %vm791, %v739
        %795 = vst.msk [vmem:[#allocation2 + $0x30] sm:$0xff] %vm791, %v741
        %796 = vst.msk [vmem:[#allocation2 + $0x40] sm:$0xff] %vm791, %v743
        %797 = vst.msk [vmem:[#allocation2 + $0x50] sm:$0xff] %vm791, %v745
        %798 = vst.msk [vmem:[#allocation2 + $0x60] sm:$0xff] %vm791, %v747
        %799 = vst.msk [vmem:[#allocation2 + $0x70] sm:$0xff] %vm791, %v749
        %800 = vst.msk [vmem:[#allocation2 + $0x80] sm:$0xff] %vm791, %v751
        %801 = vst.msk [vmem:[#allocation2 + $0x90] sm:$0xff] %vm791, %v753
        %802 = vst.msk [vmem:[#allocation2 + $0xa0] sm:$0xff] %vm791, %v755
        %803 = vst.msk [vmem:[#allocation2 + $0xb0] sm:$0xff] %vm791, %v757
        %804 = vst.msk [vmem:[#allocation2 + $0xc0] sm:$0xff] %vm791, %v759
        %805 = vst.msk [vmem:[#allocation2 + $0xd0] sm:$0xff] %vm791, %v761
        %806 = vst.msk [vmem:[#allocation2 + $0xe0] sm:$0xff] %vm791, %v763
        %807 = vst.msk [vmem:[#allocation2 + $0xf0] sm:$0xff] %vm791, %v765
        %808 = vst.msk [vmem:[#allocation2 + $0x100] sm:$0xff] %vm791, %v767
        %809 = vst.msk [vmem:[#allocation2 + $0x110] sm:$0xff] %vm791, %v769
        %810 = vst.msk [vmem:[#allocation2 + $0x120] sm:$0xff] %vm791, %v771
        %v812 = vshrl.u32 %v696, 16
        %v814 = vrot.slane %v812, 7
        %v815 = vshll.u32 %v696, 16
        %v817 = vor.u32 %v814, %v815
        %v819 = vshrl.u32 %v697, 16
        %v821 = vrot.slane %v819, 7
        %v822 = vshll.u32 %v697, 16
        %v824 = vor.u32 %v821, %v822
        %v826 = vshrl.u32 %v698, 16
        %v828 = vrot.slane %v826, 7
        %v829 = vshll.u32 %v698, 16
        %v831 = vor.u32 %v828, %v829
        %v833 = vshrl.u32 %v699, 16
        %v835 = vrot.slane %v833, 7
        %v836 = vshll.u32 %v699, 16
        %v838 = vor.u32 %v835, %v836
        %v840 = vshrl.u32 %v700, 16
        %v842 = vrot.slane %v840, 7
        %v843 = vshll.u32 %v700, 16
        %v845 = vor.u32 %v842, %v843
        %v847 = vshrl.u32 %v701, 16
        %v849 = vrot.slane %v847, 7
        %v850 = vshll.u32 %v701, 16
        %v852 = vor.u32 %v849, %v850
        %v854 = vshrl.u32 %v702, 16
        %v856 = vrot.slane %v854, 7
        %v857 = vshll.u32 %v702, 16
        %v859 = vor.u32 %v856, %v857
        %v861 = vshrl.u32 %v703, 16
        %v863 = vrot.slane %v861, 7
        %v864 = vshll.u32 %v703, 16
        %v866 = vor.u32 %v863, %v864
        %v868 = vshrl.u32 %v704, 16
        %v870 = vrot.slane %v868, 7
        %v871 = vshll.u32 %v704, 16
        %v873 = vor.u32 %v870, %v871
        %v875 = vshrl.u32 %v705, 16
        %v877 = vrot.slane %v875, 7
        %v878 = vshll.u32 %v705, 16
        %v880 = vor.u32 %v877, %v878
        %v882 = vshrl.u32 %v706, 16
        %v884 = vrot.slane %v882, 7
        %v885 = vshll.u32 %v706, 16
        %v887 = vor.u32 %v884, %v885
        %v889 = vshrl.u32 %v707, 16
        %v891 = vrot.slane %v889, 7
        %v892 = vshll.u32 %v707, 16
        %v894 = vor.u32 %v891, %v892
        %v896 = vshrl.u32 %v708, 16
        %v898 = vrot.slane %v896, 7
        %v899 = vshll.u32 %v708, 16
        %v901 = vor.u32 %v898, %v899
        %v903 = vshrl.u32 %v709, 16
        %v905 = vrot.slane %v903, 7
        %v906 = vshll.u32 %v709, 16
        %v908 = vor.u32 %v905, %v906
        %v910 = vshrl.u32 %v710, 16
        %v912 = vrot.slane %v910, 7
        %v913 = vshll.u32 %v710, 16
        %v915 = vor.u32 %v912, %v913
        %v917 = vshrl.u32 %v711, 16
        %v919 = vrot.slane %v917, 7
        %v920 = vshll.u32 %v711, 16
        %v922 = vor.u32 %v919, %v920
        %v924 = vshrl.u32 %v712, 16
        %v926 = vrot.slane %v924, 7
        %v927 = vshll.u32 %v712, 16
        %v929 = vor.u32 %v926, %v927
        %v931 = vshrl.u32 %v713, 16
        %v933 = vrot.slane %v931, 7
        %v934 = vshll.u32 %v713, 16
        %v936 = vor.u32 %v933, %v934
        %v938 = vshrl.u32 %v714, 16
        %v940 = vrot.slane %v938, 7
        %v941 = vshll.u32 %v714, 16
        %v943 = vor.u32 %v940, %v941
        %vm963 = vcmask 523264
        %vm964 = vsmask.f32 7938
        %vm965 = vmand %vm963, %vm964
        %v966 = vld [vmem:[#allocation2] sm:$0xff]
        %v967 = vsel %vm965, %v817, %v966
        %968 = vst [vmem:[#allocation2] sm:$0xff] %v967
        %v969 = vld [vmem:[#allocation2 + $0x10] sm:$0xff]
        %v970 = vsel %vm965, %v824, %v969
        %971 = vst [vmem:[#allocation2 + $0x10] sm:$0xff] %v970
        %v972 = vld [vmem:[#allocation2 + $0x20] sm:$0xff]
        %v973 = vsel %vm965, %v831, %v972
        %974 = vst [vmem:[#allocation2 + $0x20] sm:$0xff] %v973
        %v975 = vld [vmem:[#allocation2 + $0x30] sm:$0xff]
        %v976 = vsel %vm965, %v838, %v975
        %977 = vst [vmem:[#allocation2 + $0x30] sm:$0xff] %v976
        %v978 = vld [vmem:[#allocation2 + $0x40] sm:$0xff]
        %v979 = vsel %vm965, %v845, %v978
        %980 = vst [vmem:[#allocation2 + $0x40] sm:$0xff] %v979
        %v981 = vld [vmem:[#allocation2 + $0x50] sm:$0xff]
        %v982 = vsel %vm965, %v852, %v981
        %983 = vst [vmem:[#allocation2 + $0x50] sm:$0xff] %v982
        %v984 = vld [vmem:[#allocation2 + $0x60] sm:$0xff]
        %v985 = vsel %vm965, %v859, %v984
        %986 = vst [vmem:[#allocation2 + $0x60] sm:$0xff] %v985
        %v987 = vld [vmem:[#allocation2 + $0x70] sm:$0xff]
        %v988 = vsel %vm965, %v866, %v987
        %989 = vst [vmem:[#allocation2 + $0x70] sm:$0xff] %v988
        %v990 = vld [vmem:[#allocation2 + $0x80] sm:$0xff]
        %v991 = vsel %vm965, %v873, %v990
        %992 = vst [vmem:[#allocation2 + $0x80] sm:$0xff] %v991
        %v993 = vld [vmem:[#allocation2 + $0x90] sm:$0xff]
        %v994 = vsel %vm965, %v880, %v993
        %995 = vst [vmem:[#allocation2 + $0x90] sm:$0xff] %v994
        %v996 = vld [vmem:[#allocation2 + $0xa0] sm:$0xff]
        %v997 = vsel %vm965, %v887, %v996
        %998 = vst [vmem:[#allocation2 + $0xa0] sm:$0xff] %v997
        %v999 = vld [vmem:[#allocation2 + $0xb0] sm:$0xff]
        %v1000 = vsel %vm965, %v894, %v999
        %1001 = vst [vmem:[#allocation2 + $0xb0] sm:$0xff] %v1000
        %v1002 = vld [vmem:[#allocation2 + $0xc0] sm:$0xff]
        %v1003 = vsel %vm965, %v901, %v1002
        %1004 = vst [vmem:[#allocation2 + $0xc0] sm:$0xff] %v1003
        %v1005 = vld [vmem:[#allocation2 + $0xd0] sm:$0xff]
        %v1006 = vsel %vm965, %v908, %v1005
        %1007 = vst [vmem:[#allocation2 + $0xd0] sm:$0xff] %v1006
        %v1008 = vld [vmem:[#allocation2 + $0xe0] sm:$0xff]
        %v1009 = vsel %vm965, %v915, %v1008
        %1010 = vst [vmem:[#allocation2 + $0xe0] sm:$0xff] %v1009
        %v1011 = vld [vmem:[#allocation2 + $0xf0] sm:$0xff]
        %v1012 = vsel %vm965, %v922, %v1011
        %1013 = vst [vmem:[#allocation2 + $0xf0] sm:$0xff] %v1012
        %v1014 = vld [vmem:[#allocation2 + $0x100] sm:$0xff]
        %v1015 = vsel %vm965, %v929, %v1014
        %1016 = vst [vmem:[#allocation2 + $0x100] sm:$0xff] %v1015
        %v1017 = vld [vmem:[#allocation2 + $0x110] sm:$0xff]
        %v1018 = vsel %vm965, %v936, %v1017
        %1019 = vst [vmem:[#allocation2 + $0x110] sm:$0xff] %v1018
        %v1020 = vld [vmem:[#allocation2 + $0x120] sm:$0xff]
        %v1021 = vsel %vm965, %v943, %v1020
        %1022 = vst [vmem:[#allocation2 + $0x120] sm:$0xff] %v1021
        %vm1023 = vcmask 516096
        %vm1024 = vsmask.f32 256
        %vm1025 = vmand %vm1023, %vm1024
        %v1026 = vld [vmem:[#allocation2] sm:$0x1]
        %v1027 = vsel %vm1025, 0, %v1026
        %1028 = vst [vmem:[#allocation2] sm:$0x1] %v1027
        %v1029 = vld [vmem:[#allocation2 + $0x10] sm:$0x1]
        %v1030 = vsel %vm1025, 0, %v1029
        %1031 = vst [vmem:[#allocation2 + $0x10] sm:$0x1] %v1030
        %v1032 = vld [vmem:[#allocation2 + $0x20] sm:$0x1]
        %v1033 = vsel %vm1025, 0, %v1032
        %1034 = vst [vmem:[#allocation2 + $0x20] sm:$0x1] %v1033
        %v1035 = vld [vmem:[#allocation2 + $0x30] sm:$0x1]
        %v1036 = vsel %vm1025, 0, %v1035
        %1037 = vst [vmem:[#allocation2 + $0x30] sm:$0x1] %v1036
        %v1038 = vld [vmem:[#allocation2 + $0x40] sm:$0x1]
        %v1039 = vsel %vm1025, 0, %v1038
        %1040 = vst [vmem:[#allocation2 + $0x40] sm:$0x1] %v1039
        %v1041 = vld [vmem:[#allocation2 + $0x50] sm:$0x1]
        %v1042 = vsel %vm1025, 0, %v1041
        %1043 = vst [vmem:[#allocation2 + $0x50] sm:$0x1] %v1042
        %v1044 = vld [vmem:[#allocation2 + $0x60] sm:$0x1]
        %v1045 = vsel %vm1025, 0, %v1044
        %1046 = vst [vmem:[#allocation2 + $0x60] sm:$0x1] %v1045
        %v1047 = vld [vmem:[#allocation2 + $0x70] sm:$0x1]
        %v1048 = vsel %vm1025, 0, %v1047
        %1049 = vst [vmem:[#allocation2 + $0x70] sm:$0x1] %v1048
        %v1050 = vld [vmem:[#allocation2 + $0x80] sm:$0x1]
        %v1051 = vsel %vm1025, 0, %v1050
        %1052 = vst [vmem:[#allocation2 + $0x80] sm:$0x1] %v1051
        %v1053 = vld [vmem:[#allocation2 + $0x90] sm:$0x1]
        %v1054 = vsel %vm1025, 0, %v1053
        %1055 = vst [vmem:[#allocation2 + $0x90] sm:$0x1] %v1054
        %v1056 = vld [vmem:[#allocation2 + $0xa0] sm:$0x1]
        %v1057 = vsel %vm1025, 0, %v1056
        %1058 = vst [vmem:[#allocation2 + $0xa0] sm:$0x1] %v1057
        %v1059 = vld [vmem:[#allocation2 + $0xb0] sm:$0x1]
        %v1060 = vsel %vm1025, 0, %v1059
        %1061 = vst [vmem:[#allocation2 + $0xb0] sm:$0x1] %v1060
        %v1062 = vld [vmem:[#allocation2 + $0xc0] sm:$0x1]
        %v1063 = vsel %vm1025, 0, %v1062
        %1064 = vst [vmem:[#allocation2 + $0xc0] sm:$0x1] %v1063
        %v1065 = vld [vmem:[#allocation2 + $0xd0] sm:$0x1]
        %v1066 = vsel %vm1025, 0, %v1065
        %1067 = vst [vmem:[#allocation2 + $0xd0] sm:$0x1] %v1066
        %v1068 = vld [vmem:[#allocation2 + $0xe0] sm:$0x1]
        %v1069 = vsel %vm1025, 0, %v1068
        %1070 = vst [vmem:[#allocation2 + $0xe0] sm:$0x1] %v1069
        %v1071 = vld [vmem:[#allocation2 + $0xf0] sm:$0x1]
        %v1072 = vsel %vm1025, 0, %v1071
        %1073 = vst [vmem:[#allocation2 + $0xf0] sm:$0x1] %v1072
        %v1074 = vld [vmem:[#allocation2 + $0x100] sm:$0x1]
        %v1075 = vsel %vm1025, 0, %v1074
        %1076 = vst [vmem:[#allocation2 + $0x100] sm:$0x1] %v1075
        %v1077 = vld [vmem:[#allocation2 + $0x110] sm:$0x1]
        %v1078 = vsel %vm1025, 0, %v1077
        %1079 = vst [vmem:[#allocation2 + $0x110] sm:$0x1] %v1078
        %v1080 = vld [vmem:[#allocation2 + $0x120] sm:$0x1]
        %v1081 = vsel %vm1025, 0, %v1080
        %1082 = vst [vmem:[#allocation2 + $0x120] sm:$0x1] %v1081
        %v1083 = vrot.slane %v815, 1
        %v1084 = vor.u32 %v812, %v1083
        %v1085 = vrot.slane %v822, 1
        %v1086 = vor.u32 %v819, %v1085
        %v1087 = vrot.slane %v829, 1
        %v1088 = vor.u32 %v826, %v1087
        %v1089 = vrot.slane %v836, 1
        %v1090 = vor.u32 %v833, %v1089
        %v1091 = vrot.slane %v843, 1
        %v1092 = vor.u32 %v840, %v1091
        %v1093 = vrot.slane %v850, 1
        %v1094 = vor.u32 %v847, %v1093
        %v1095 = vrot.slane %v857, 1
        %v1096 = vor.u32 %v854, %v1095
        %v1097 = vrot.slane %v864, 1
        %v1098 = vor.u32 %v861, %v1097
        %v1099 = vrot.slane %v871, 1
        %v1100 = vor.u32 %v868, %v1099
        %v1101 = vrot.slane %v878, 1
        %v1102 = vor.u32 %v875, %v1101
        %v1103 = vrot.slane %v885, 1
        %v1104 = vor.u32 %v882, %v1103
        %v1105 = vrot.slane %v892, 1
        %v1106 = vor.u32 %v889, %v1105
        %v1107 = vrot.slane %v899, 1
        %v1108 = vor.u32 %v896, %v1107
        %v1109 = vrot.slane %v906, 1
        %v1110 = vor.u32 %v903, %v1109
        %v1111 = vrot.slane %v913, 1
        %v1112 = vor.u32 %v910, %v1111
        %v1113 = vrot.slane %v920, 1
        %v1114 = vor.u32 %v917, %v1113
        %v1115 = vrot.slane %v927, 1
        %v1116 = vor.u32 %v924, %v1115
        %v1117 = vrot.slane %v934, 1
        %v1118 = vor.u32 %v931, %v1117
        %v1119 = vrot.slane %v941, 1
        %v1120 = vor.u32 %v938, %v1119
        %vm1140 = vsmask.f32 7424
        %vm1141 = vmand %vm963, %vm1140
        %v1142 = vld [vmem:[#allocation2 + $0x8] sm:$0xff]
        %v1143 = vsel %vm1141, %v1084, %v1142
        %1144 = vst [vmem:[#allocation2 + $0x8] sm:$0xff] %v1143
        %v1145 = vld [vmem:[#allocation2 + $0x18] sm:$0xff]
        %v1146 = vsel %vm1141, %v1086, %v1145
        %1147 = vst [vmem:[#allocation2 + $0x18] sm:$0xff] %v1146
        %v1148 = vld [vmem:[#allocation2 + $0x28] sm:$0xff]
        %v1149 = vsel %vm1141, %v1088, %v1148
        %1150 = vst [vmem:[#allocation2 + $0x28] sm:$0xff] %v1149
        %v1151 = vld [vmem:[#allocation2 + $0x38] sm:$0xff]
        %v1152 = vsel %vm1141, %v1090, %v1151
        %1153 = vst [vmem:[#allocation2 + $0x38] sm:$0xff] %v1152
        %v1154 = vld [vmem:[#allocation2 + $0x48] sm:$0xff]
        %v1155 = vsel %vm1141, %v1092, %v1154
        %1156 = vst [vmem:[#allocation2 + $0x48] sm:$0xff] %v1155
        %v1157 = vld [vmem:[#allocation2 + $0x58] sm:$0xff]
        %v1158 = vsel %vm1141, %v1094, %v1157
        %1159 = vst [vmem:[#allocation2 + $0x58] sm:$0xff] %v1158
        %v1160 = vld [vmem:[#allocation2 + $0x68] sm:$0xff]
        %v1161 = vsel %vm1141, %v1096, %v1160
        %1162 = vst [vmem:[#allocation2 + $0x68] sm:$0xff] %v1161
        %v1163 = vld [vmem:[#allocation2 + $0x78] sm:$0xff]
        %v1164 = vsel %vm1141, %v1098, %v1163
        %1165 = vst [vmem:[#allocation2 + $0x78] sm:$0xff] %v1164
        %v1166 = vld [vmem:[#allocation2 + $0x88] sm:$0xff]
        %v1167 = vsel %vm1141, %v1100, %v1166
        %1168 = vst [vmem:[#allocation2 + $0x88] sm:$0xff] %v1167
        %v1169 = vld [vmem:[#allocation2 + $0x98] sm:$0xff]
        %v1170 = vsel %vm1141, %v1102, %v1169
        %1171 = vst [vmem:[#allocation2 + $0x98] sm:$0xff] %v1170
        %v1172 = vld [vmem:[#allocation2 + $0xa8] sm:$0xff]
        %v1173 = vsel %vm1141, %v1104, %v1172
        %1174 = vst [vmem:[#allocation2 + $0xa8] sm:$0xff] %v1173
        %v1175 = vld [vmem:[#allocation2 + $0xb8] sm:$0xff]
        %v1176 = vsel %vm1141, %v1106, %v1175
        %1177 = vst [vmem:[#allocation2 + $0xb8] sm:$0xff] %v1176
        %v1178 = vld [vmem:[#allocation2 + $0xc8] sm:$0xff]
        %v1179 = vsel %vm1141, %v1108, %v1178
        %1180 = vst [vmem:[#allocation2 + $0xc8] sm:$0xff] %v1179
        %v1181 = vld [vmem:[#allocation2 + $0xd8] sm:$0xff]
        %v1182 = vsel %vm1141, %v1110, %v1181
        %1183 = vst [vmem:[#allocation2 + $0xd8] sm:$0xff] %v1182
        %v1184 = vld [vmem:[#allocation2 + $0xe8] sm:$0xff]
        %v1185 = vsel %vm1141, %v1112, %v1184
        %1186 = vst [vmem:[#allocation2 + $0xe8] sm:$0xff] %v1185
        %v1187 = vld [vmem:[#allocation2 + $0xf8] sm:$0xff]
        %v1188 = vsel %vm1141, %v1114, %v1187
        %1189 = vst [vmem:[#allocation2 + $0xf8] sm:$0xff] %v1188
        %v1190 = vld [vmem:[#allocation2 + $0x108] sm:$0xff]
        %v1191 = vsel %vm1141, %v1116, %v1190
        %1192 = vst [vmem:[#allocation2 + $0x108] sm:$0xff] %v1191
        %v1193 = vld [vmem:[#allocation2 + $0x118] sm:$0xff]
        %v1194 = vsel %vm1141, %v1118, %v1193
        %1195 = vst [vmem:[#allocation2 + $0x118] sm:$0xff] %v1194
        %v1196 = vld [vmem:[#allocation2 + $0x128] sm:$0xff]
        %v1197 = vsel %vm1141, %v1120, %v1196
        %1198 = vst [vmem:[#allocation2 + $0x128] sm:$0xff] %v1197
        %vm1199 = vcmask 523271
        %vm1200 = vsmask.f32 7966
        %vm1201 = vmand %vm1199, %vm1200
        %v1202 = vld [vmem:[#allocation2 + $0x8] sm:$0x80]
        %v1203 = vsel %vm1201, 0, %v1202
        %1204 = vst [vmem:[#allocation2 + $0x8] sm:$0x80] %v1203
        %v1205 = vld [vmem:[#allocation2 + $0x18] sm:$0x80]
        %v1206 = vsel %vm1201, 0, %v1205
        %1207 = vst [vmem:[#allocation2 + $0x18] sm:$0x80] %v1206
        %v1208 = vld [vmem:[#allocation2 + $0x28] sm:$0x80]
        %v1209 = vsel %vm1201, 0, %v1208
        %1210 = vst [vmem:[#allocation2 + $0x28] sm:$0x80] %v1209
        %v1211 = vld [vmem:[#allocation2 + $0x38] sm:$0x80]
        %v1212 = vsel %vm1201, 0, %v1211
        %1213 = vst [vmem:[#allocation2 + $0x38] sm:$0x80] %v1212
        %v1214 = vld [vmem:[#allocation2 + $0x48] sm:$0x80]
        %v1215 = vsel %vm1201, 0, %v1214
        %1216 = vst [vmem:[#allocation2 + $0x48] sm:$0x80] %v1215
        %v1217 = vld [vmem:[#allocation2 + $0x58] sm:$0x80]
        %v1218 = vsel %vm1201, 0, %v1217
        %1219 = vst [vmem:[#allocation2 + $0x58] sm:$0x80] %v1218
        %v1220 = vld [vmem:[#allocation2 + $0x68] sm:$0x80]
        %v1221 = vsel %vm1201, 0, %v1220
        %1222 = vst [vmem:[#allocation2 + $0x68] sm:$0x80] %v1221
        %v1223 = vld [vmem:[#allocation2 + $0x78] sm:$0x80]
        %v1224 = vsel %vm1201, 0, %v1223
        %1225 = vst [vmem:[#allocation2 + $0x78] sm:$0x80] %v1224
        %v1226 = vld [vmem:[#allocation2 + $0x88] sm:$0x80]
        %v1227 = vsel %vm1201, 0, %v1226
        %1228 = vst [vmem:[#allocation2 + $0x88] sm:$0x80] %v1227
        %v1229 = vld [vmem:[#allocation2 + $0x98] sm:$0x80]
        %v1230 = vsel %vm1201, 0, %v1229
        %1231 = vst [vmem:[#allocation2 + $0x98] sm:$0x80] %v1230
        %v1232 = vld [vmem:[#allocation2 + $0xa8] sm:$0x80]
        %v1233 = vsel %vm1201, 0, %v1232
        %1234 = vst [vmem:[#allocation2 + $0xa8] sm:$0x80] %v1233
        %v1235 = vld [vmem:[#allocation2 + $0xb8] sm:$0x80]
        %v1236 = vsel %vm1201, 0, %v1235
        %1237 = vst [vmem:[#allocation2 + $0xb8] sm:$0x80] %v1236
        %v1238 = vld [vmem:[#allocation2 + $0xc8] sm:$0x80]
        %v1239 = vsel %vm1201, 0, %v1238
        %1240 = vst [vmem:[#allocation2 + $0xc8] sm:$0x80] %v1239
        %v1241 = vld [vmem:[#allocation2 + $0xd8] sm:$0x80]
        %v1242 = vsel %vm1201, 0, %v1241
        %1243 = vst [vmem:[#allocation2 + $0xd8] sm:$0x80] %v1242
        %v1244 = vld [vmem:[#allocation2 + $0xe8] sm:$0x80]
        %v1245 = vsel %vm1201, 0, %v1244
        %1246 = vst [vmem:[#allocation2 + $0xe8] sm:$0x80] %v1245
        %v1247 = vld [vmem:[#allocation2 + $0xf8] sm:$0x80]
        %v1248 = vsel %vm1201, 0, %v1247
        %1249 = vst [vmem:[#allocation2 + $0xf8] sm:$0x80] %v1248
        %v1250 = vld [vmem:[#allocation2 + $0x108] sm:$0x80]
        %v1251 = vsel %vm1201, 0, %v1250
        %1252 = vst [vmem:[#allocation2 + $0x108] sm:$0x80] %v1251
        %v1253 = vld [vmem:[#allocation2 + $0x118] sm:$0x80]
        %v1254 = vsel %vm1201, 0, %v1253
        %1255 = vst [vmem:[#allocation2 + $0x118] sm:$0x80] %v1254
        %v1256 = vld [vmem:[#allocation2 + $0x128] sm:$0x80]
        %v1257 = vsel %vm1201, 0, %v1256
        %1258 = vst [vmem:[#allocation2 + $0x128] sm:$0x80] %v1257
        %p1259 = scmp.eq.s32.totalorder %s24, 0
        // Predicated region
        $region41: #{tpu_custom_call.1} parent=39 // pred_check
          %p1260 = pneg %p1259
        $region42: #{tpu_custom_call.1} parent=39 // pred_check_branch
          %1262 = sbr.rel (%p1260) target = $region44
        $region43: #{tpu_custom_call.1} parent=39 // pred_region
          %1263 = vst [vmem:[#allocation2] sm:$0xff] 0
          %vm1264 = vcmask 523264
          %1265 = vst.msk [vmem:[#allocation2 + $0x8] sm:$0xff] %vm1264, 0
          %1266 = vst [vmem:[#allocation2 + $0x10] sm:$0xff] 0
          %1267 = vst.msk [vmem:[#allocation2 + $0x18] sm:$0xff] %vm1264, 0
          %s1268 = scalar_lea.vmem [#allocation2], 288
          %1269 = vst [vmem:[%s1268] sm:$0xff] 0
          %1270 = vst.msk [vmem:[%s1268 + $0x8] sm:$0xff] %vm1264, 0
        $region44: #{tpu_custom_call.1} parent=39 // pred_fallthru
          _
        %v1271 = vld [vmem:[%s4] sm:$0x1]
        %v1273 = vlaneseq
        %v1274 = vshrl.u32 %v1273, 7
        %v1275 = vsub.s32 0, %v1274
        %v1276 = vrot.slane %v1271, %v1275
        %v1278 = vld [vmem:[#allocation2] sm:$0xff]
        %v1279 = vld [vmem:[#allocation2 + $0x8] sm:$0xff]
        %v1280 = vld [vmem:[#allocation2 + $0x10] sm:$0xff]
        %v1281 = vld [vmem:[#allocation2 + $0x18] sm:$0xff]
        %v1282 = vld [vmem:[#allocation2 + $0x20] sm:$0xff]
        %v1283 = vld [vmem:[#allocation2 + $0x28] sm:$0xff]
        %v1284 = vld [vmem:[#allocation2 + $0x30] sm:$0xff]
        %v1285 = vld [vmem:[#allocation2 + $0x38] sm:$0xff]
        %v1286 = vld [vmem:[#allocation2 + $0x40] sm:$0xff]
        %v1287 = vld [vmem:[#allocation2 + $0x48] sm:$0xff]
        %v1288 = vld [vmem:[#allocation2 + $0x50] sm:$0xff]
        %v1289 = vld [vmem:[#allocation2 + $0x58] sm:$0xff]
        %v1290 = vld [vmem:[#allocation2 + $0x60] sm:$0xff]
        %v1291 = vld [vmem:[#allocation2 + $0x68] sm:$0xff]
        %v1292 = vld [vmem:[#allocation2 + $0x70] sm:$0xff]
        %v1293 = vld [vmem:[#allocation2 + $0x78] sm:$0xff]
        %v1294 = vld [vmem:[#allocation2 + $0x80] sm:$0xff]
        %v1295 = vld [vmem:[#allocation2 + $0x88] sm:$0xff]
        %v1296 = vld [vmem:[#allocation2 + $0x90] sm:$0xff]
        %v1297 = vld [vmem:[#allocation2 + $0x98] sm:$0xff]
        %v1298 = vld [vmem:[#allocation2 + $0xa0] sm:$0xff]
        %v1299 = vld [vmem:[#allocation2 + $0xa8] sm:$0xff]
        %v1300 = vld [vmem:[#allocation2 + $0xb0] sm:$0xff]
        %v1301 = vld [vmem:[#allocation2 + $0xb8] sm:$0xff]
        %v1302 = vld [vmem:[#allocation2 + $0xc0] sm:$0xff]
        %v1303 = vld [vmem:[#allocation2 + $0xc8] sm:$0xff]
        %v1304 = vld [vmem:[#allocation2 + $0xd0] sm:$0xff]
        %v1305 = vld [vmem:[#allocation2 + $0xd8] sm:$0xff]
        %v1306 = vld [vmem:[#allocation2 + $0xe0] sm:$0xff]
        %v1307 = vld [vmem:[#allocation2 + $0xe8] sm:$0xff]
        %v1308 = vld [vmem:[#allocation2 + $0xf0] sm:$0xff]
        %v1309 = vld [vmem:[#allocation2 + $0xf8] sm:$0xff]
        %v1310 = vld [vmem:[#allocation2 + $0x100] sm:$0xff]
        %v1311 = vld [vmem:[#allocation2 + $0x108] sm:$0xff]
        %v1312 = vld [vmem:[%s3] sm:$0xf]
        %v1313 = vld [vmem:[%s3 + $0x4] sm:$0xf]
        %v1314 = vld [vmem:[%s3 + $0x8] sm:$0xf]
        %v1315 = vld [vmem:[%s3 + $0xc] sm:$0xf]
        %v1316 = vld [vmem:[%s3 + $0x10] sm:$0xf]
        %v1317 = vld [vmem:[%s3 + $0x14] sm:$0xf]
        %v1318 = vld [vmem:[%s3 + $0x18] sm:$0xf]
        %v1319 = vld [vmem:[%s3 + $0x1c] sm:$0xf]
        %v1320 = vld [vmem:[%s3 + $0x20] sm:$0xf]
        %v1321 = vld [vmem:[%s3 + $0x24] sm:$0xf]
        %v1322 = vld [vmem:[%s3 + $0x28] sm:$0xf]
        %v1323 = vld [vmem:[%s3 + $0x2c] sm:$0xf]
        %v1324 = vld [vmem:[%s3 + $0x30] sm:$0xf]
        %v1325 = vld [vmem:[%s3 + $0x34] sm:$0xf]
        %v1326 = vld [vmem:[%s3 + $0x38] sm:$0xf]
        %v1327 = vld [vmem:[%s3 + $0x3c] sm:$0xf]
        %v1328 = vld [vmem:[%s3 + $0x40] sm:$0xf]
        %v1329 = vld [vmem:[%s3 + $0x44] sm:$0xf]
        %v1330 = vld [vmem:[%s3 + $0x48] sm:$0xf]
        %v1331 = vld [vmem:[%s3 + $0x4c] sm:$0xf]
        %v1332 = vld [vmem:[%s3 + $0x50] sm:$0xf]
        %v1333 = vld [vmem:[%s3 + $0x54] sm:$0xf]
        %v1334 = vld [vmem:[%s3 + $0x58] sm:$0xf]
        %v1335 = vld [vmem:[%s3 + $0x5c] sm:$0xf]
        %v1360 = vunpack.c.l.b16 %v1312
        %v1361 = vunpack.c.l.b16 %v1313
        %v1362 = vunpack.c.l.b16 %v1314
        %v1363 = vunpack.c.l.b16 %v1315
        %v1364 = vunpack.c.l.b16 %v1316
        %v1365 = vunpack.c.l.b16 %v1317
        %v1366 = vunpack.c.l.b16 %v1318
        %v1367 = vunpack.c.l.b16 %v1319
        %v1368 = vunpack.c.l.b16 %v1320
        %v1369 = vunpack.c.l.b16 %v1321
        %v1370 = vunpack.c.l.b16 %v1322
        %v1371 = vunpack.c.l.b16 %v1323
        %v1372 = vunpack.c.l.b16 %v1324
        %v1373 = vunpack.c.l.b16 %v1325
        %v1374 = vunpack.c.l.b16 %v1326
        %v1375 = vunpack.c.l.b16 %v1327
        %v1376 = vunpack.c.l.b16 %v1328
        %v1377 = vunpack.c.l.b16 %v1329
        %v1378 = vunpack.c.l.b16 %v1330
        %v1379 = vunpack.c.l.b16 %v1331
        %v1380 = vunpack.c.l.b16 %v1332
        %v1381 = vunpack.c.l.b16 %v1333
        %v1382 = vunpack.c.l.b16 %v1334
        %v1383 = vunpack.c.l.b16 %v1335
        %v1384 = vpack.c.b16 %v1361, %v1360
        %v1385 = vpack.c.b16 %v1363, %v1362
        %v1386 = vpack.c.b16 %v1365, %v1364
        %v1387 = vpack.c.b16 %v1367, %v1366
        %v1388 = vpack.c.b16 %v1369, %v1368
        %v1389 = vpack.c.b16 %v1371, %v1370
        %v1390 = vpack.c.b16 %v1373, %v1372
        %v1391 = vpack.c.b16 %v1375, %v1374
        %v1392 = vpack.c.b16 %v1377, %v1376
        %v1393 = vpack.c.b16 %v1379, %v1378
        %v1394 = vpack.c.b16 %v1381, %v1380
        %v1395 = vpack.c.b16 %v1383, %v1382
        %vm1408 = vcmask 523264
        %v1410 = vsel %vm1408, %v1279, 0
        %v1413 = vsel %vm1408, %v1281, 0
        %v1416 = vsel %vm1408, %v1283, 0
        %v1419 = vsel %vm1408, %v1285, 0
        %v1422 = vsel %vm1408, %v1287, 0
        %v1425 = vsel %vm1408, %v1289, 0
        %v1428 = vsel %vm1408, %v1291, 0
        %v1431 = vsel %vm1408, %v1293, 0
        %v1434 = vsel %vm1408, %v1295, 0
        %v1437 = vsel %vm1408, %v1297, 0
        %v1440 = vsel %vm1408, %v1299, 0
        %v1443 = vsel %vm1408, %v1301, 0
        %v1446 = vsel %vm1408, %v1303, 0
        %v1449 = vsel %vm1408, %v1305, 0
        %v1452 = vsel %vm1408, %v1307, 0
        %v1455 = vsel %vm1408, %v1309, 0
        %v1458 = vsel %vm1408, %v1311, 0
        %1460 = vmatprep.subr.bf16.mxu0 0
        %1461 = vmatpush1.bf16.msra.mxu0 %v1384
        %1462 = vmatprep.subr.bf16.mxu0 0
        %1463 = vmatpush1.bf16.msra.mxu0 %v1385
        %1464 = vmatprep.subr.bf16.mxu0 0
        %1465 = vmatpush1.bf16.msra.mxu0 %v1386
        %1466 = vmatprep.subr.bf16.mxu0 0
        %1467 = vmatpush1.bf16.msra.mxu0 %v1387
        %1468 = vmatprep.subr.bf16.mxu0 0
        %1469 = vmatpush1.bf16.msra.mxu0 %v1388
        %1470 = vmatprep.subr.bf16.mxu0 0
        %1471 = vmatpush1.bf16.msra.mxu0 %v1389
        %1472 = vmatprep.subr.bf16.mxu0 0
        %1473 = vmatpush1.bf16.msra.mxu0 %v1390
        %1474 = vmatprep.subr.bf16.mxu0 0
        %1475 = vmatpush1.bf16.msra.mxu0 %v1391
        %1476 = vmatprep.subr.bf16.mxu0 0
        %1477 = vmatpush1.bf16.msra.mxu0 %v1392
        %1478 = vmatprep.subr.bf16.mxu0 0
        %1479 = vmatpush1.bf16.msra.mxu0 %v1393
        %1480 = vmatprep.subr.bf16.mxu0 0
        %1481 = vmatpush1.bf16.msra.mxu0 %v1394
        %1482 = vmatprep.subr.bf16.mxu0 0
        %1483 = vmatpush1.bf16.msra.mxu0 %v1395
        %1484 = vmatprep.subr.bf16.mxu0 0
        %1485 = vmatpush1.bf16.msra.mxu0 0
        %1486 = vmatprep.subr.bf16.mxu0 0
        %1487 = vmatpush1.bf16.msra.mxu0 0
        %1488 = vmatprep.subr.bf16.mxu0 0
        %1489 = vmatpush1.bf16.msra.mxu0 0
        %1490 = vmatprep.subr.bf16.mxu0 0
        %1491 = vmatpush1.bf16.msra.mxu0 0
        %1492 = vmatprep.mubr.bf16.mxu0 %v1410
        %1493 = vmatmul.mubr.bf16.gmra.mrb[0].mxu0 %v1278
        %v1494 = vpop.f32.mrb[0].mxu0
        %v1495 = vadd.f32 0.0, %v1494
        %v1496 = vpop.f32.mrb[0].mxu0
        %v1497 = vpop.f32.mrb[0].mxu0
        %v1498 = vadd.f32 0.0, %v1497
        %v1499 = vpop.f32.mrb[0].mxu0
        %1500 = vmatprep.mubr.bf16.mxu0 %v1413
        %1501 = vmatmul.mubr.bf16.gmra.mrb[0].mxu0 %v1280
        %v1502 = vpop.f32.mrb[0].mxu0
        %v1503 = vadd.f32 0.0, %v1502
        %v1504 = vpop.f32.mrb[0].mxu0
        %v1505 = vpop.f32.mrb[0].mxu0
        %v1506 = vadd.f32 0.0, %v1505
        %v1507 = vpop.f32.mrb[0].mxu0
        %1508 = vmatprep.mubr.bf16.mxu0 %v1416
        %1509 = vmatmul.mubr.bf16.gmra.mrb[0].mxu0 %v1282
        %v1510 = vpop.f32.mrb[0].mxu0
        %v1511 = vadd.f32 0.0, %v1510
        %v1512 = vpop.f32.mrb[0].mxu0
        %v1513 = vpop.f32.mrb[0].mxu0
        %v1514 = vadd.f32 0.0, %v1513
        %v1515 = vpop.f32.mrb[0].mxu0
        %1516 = vmatprep.mubr.bf16.mxu0 %v1419
        %1517 = vmatmul.mubr.bf16.gmra.mrb[0].mxu0 %v1284
        %v1518 = vpop.f32.mrb[0].mxu0
        %v1519 = vadd.f32 0.0, %v1518
        %v1520 = vpop.f32.mrb[0].mxu0
        %v1521 = vpop.f32.mrb[0].mxu0
        %v1522 = vadd.f32 0.0, %v1521
        %v1523 = vpop.f32.mrb[0].mxu0
        %1524 = vmatprep.mubr.bf16.mxu0 %v1422
        %1525 = vmatmul.mubr.bf16.gmra.mrb[0].mxu0 %v1286
        %v1526 = vpop.f32.mrb[0].mxu0
        %v1527 = vadd.f32 0.0, %v1526
        %v1528 = vpop.f32.mrb[0].mxu0
        %v1529 = vpop.f32.mrb[0].mxu0
        %v1530 = vadd.f32 0.0, %v1529
        %v1531 = vpop.f32.mrb[0].mxu0
        %1532 = vmatprep.mubr.bf16.mxu0 %v1425
        %1533 = vmatmul.mubr.bf16.gmra.mrb[0].mxu0 %v1288
        %v1534 = vpop.f32.mrb[0].mxu0
        %v1535 = vadd.f32 0.0, %v1534
        %v1536 = vpop.f32.mrb[0].mxu0
        %v1537 = vpop.f32.mrb[0].mxu0
        %v1538 = vadd.f32 0.0, %v1537
        %v1539 = vpop.f32.mrb[0].mxu0
        %1540 = vmatprep.mubr.bf16.mxu0 %v1428
        %1541 = vmatmul.mubr.bf16.gmra.mrb[0].mxu0 %v1290
        %v1542 = vpop.f32.mrb[0].mxu0
        %v1543 = vadd.f32 0.0, %v1542
        %v1544 = vpop.f32.mrb[0].mxu0
        %v1545 = vpop.f32.mrb[0].mxu0
        %v1546 = vadd.f32 0.0, %v1545
        %v1547 = vpop.f32.mrb[0].mxu0
        %1548 = vmatprep.mubr.bf16.mxu0 %v1431
        %1549 = vmatmul.mubr.bf16.gmra.mrb[0].mxu0 %v1292
        %v1550 = vpop.f32.mrb[0].mxu0
        %v1551 = vadd.f32 0.0, %v1550
        %v1552 = vpop.f32.mrb[0].mxu0
        %v1553 = vpop.f32.mrb[0].mxu0
        %v1554 = vadd.f32 0.0, %v1553
        %v1555 = vpop.f32.mrb[0].mxu0
        %1556 = vmatprep.mubr.bf16.mxu0 %v1434
        %1557 = vmatmul.mubr.bf16.gmra.mrb[0].mxu0 %v1294
        %v1558 = vpop.f32.mrb[0].mxu0
        %v1559 = vadd.f32 0.0, %v1558
        %v1560 = vpop.f32.mrb[0].mxu0
        %v1561 = vpop.f32.mrb[0].mxu0
        %v1562 = vadd.f32 0.0, %v1561
        %v1563 = vpop.f32.mrb[0].mxu0
        %1564 = vmatprep.mubr.bf16.mxu0 %v1437
        %1565 = vmatmul.mubr.bf16.gmra.mrb[0].mxu0 %v1296
        %v1566 = vpop.f32.mrb[0].mxu0
        %v1567 = vadd.f32 0.0, %v1566
        %v1568 = vpop.f32.mrb[0].mxu0
        %v1569 = vpop.f32.mrb[0].mxu0
        %v1570 = vadd.f32 0.0, %v1569
        %v1571 = vpop.f32.mrb[0].mxu0
        %1572 = vmatprep.mubr.bf16.mxu0 %v1440
        %1573 = vmatmul.mubr.bf16.gmra.mrb[0].mxu0 %v1298
        %v1574 = vpop.f32.mrb[0].mxu0
        %v1575 = vadd.f32 0.0, %v1574
        %v1576 = vpop.f32.mrb[0].mxu0
        %v1577 = vpop.f32.mrb[0].mxu0
        %v1578 = vadd.f32 0.0, %v1577
        %v1579 = vpop.f32.mrb[0].mxu0
        %1580 = vmatprep.mubr.bf16.mxu0 %v1443
        %1581 = vmatmul.mubr.bf16.gmra.mrb[0].mxu0 %v1300
        %v1582 = vpop.f32.mrb[0].mxu0
        %v1583 = vadd.f32 0.0, %v1582
        %v1584 = vpop.f32.mrb[0].mxu0
        %v1585 = vpop.f32.mrb[0].mxu0
        %v1586 = vadd.f32 0.0, %v1585
        %v1587 = vpop.f32.mrb[0].mxu0
        %1588 = vmatprep.mubr.bf16.mxu0 %v1446
        %1589 = vmatmul.mubr.bf16.gmra.mrb[0].mxu0 %v1302
        %v1590 = vpop.f32.mrb[0].mxu0
        %v1591 = vadd.f32 0.0, %v1590
        %v1592 = vpop.f32.mrb[0].mxu0
        %v1593 = vpop.f32.mrb[0].mxu0
        %v1594 = vadd.f32 0.0, %v1593
        %v1595 = vpop.f32.mrb[0].mxu0
        %1596 = vmatprep.mubr.bf16.mxu0 %v1449
        %1597 = vmatmul.mubr.bf16.gmra.mrb[0].mxu0 %v1304
        %v1598 = vpop.f32.mrb[0].mxu0
        %v1599 = vadd.f32 0.0, %v1598
        %v1600 = vpop.f32.mrb[0].mxu0
        %v1601 = vpop.f32.mrb[0].mxu0
        %v1602 = vadd.f32 0.0, %v1601
        %v1603 = vpop.f32.mrb[0].mxu0
        %1604 = vmatprep.mubr.bf16.mxu0 %v1452
        %1605 = vmatmul.mubr.bf16.gmra.mrb[0].mxu0 %v1306
        %v1606 = vpop.f32.mrb[0].mxu0
        %v1607 = vadd.f32 0.0, %v1606
        %v1608 = vpop.f32.mrb[0].mxu0
        %v1609 = vpop.f32.mrb[0].mxu0
        %v1610 = vadd.f32 0.0, %v1609
        %v1611 = vpop.f32.mrb[0].mxu0
        %1612 = vmatprep.mubr.bf16.mxu0 %v1455
        %1613 = vmatmul.mubr.bf16.gmra.mrb[0].mxu0 %v1308
        %v1614 = vpop.f32.mrb[0].mxu0
        %v1615 = vadd.f32 0.0, %v1614
        %v1616 = vpop.f32.mrb[0].mxu0
        %v1617 = vpop.f32.mrb[0].mxu0
        %v1618 = vadd.f32 0.0, %v1617
        %v1619 = vpop.f32.mrb[0].mxu0
        %1620 = vmatprep.mubr.bf16.mxu0 %v1458
        %1621 = vmatmul.mubr.bf16.gmra.mrb[0].mxu0 %v1310
        %v1622 = vpop.f32.mrb[0].mxu0
        %v1623 = vadd.f32 0.0, %v1622
        %v1624 = vpop.f32.mrb[0].mxu0
        %v1625 = vpop.f32.mrb[0].mxu0
        %v1626 = vadd.f32 0.0, %v1625
        %v1627 = vpop.f32.mrb[0].mxu0
        %1628 = vdwg.mxu0
        %v1629 = vadd.f32 %v1276, %v1495
        %v1630 = vadd.f32 %v1276, %v1498
        %v1631 = vadd.f32 %v1276, %v1503
        %v1632 = vadd.f32 %v1276, %v1506
        %v1633 = vadd.f32 %v1276, %v1511
        %v1634 = vadd.f32 %v1276, %v1514
        %v1635 = vadd.f32 %v1276, %v1519
        %v1636 = vadd.f32 %v1276, %v1522
        %v1637 = vadd.f32 %v1276, %v1527
        %v1638 = vadd.f32 %v1276, %v1530
        %v1639 = vadd.f32 %v1276, %v1535
        %v1640 = vadd.f32 %v1276, %v1538
        %v1641 = vadd.f32 %v1276, %v1543
        %v1642 = vadd.f32 %v1276, %v1546
        %v1643 = vadd.f32 %v1276, %v1551
        %v1644 = vadd.f32 %v1276, %v1554
        %v1645 = vadd.f32 %v1276, %v1559
        %v1646 = vadd.f32 %v1276, %v1562
        %v1647 = vadd.f32 %v1276, %v1567
        %v1648 = vadd.f32 %v1276, %v1570
        %v1649 = vadd.f32 %v1276, %v1575
        %v1650 = vadd.f32 %v1276, %v1578
        %v1651 = vadd.f32 %v1276, %v1583
        %v1652 = vadd.f32 %v1276, %v1586
        %v1653 = vadd.f32 %v1276, %v1591
        %v1654 = vadd.f32 %v1276, %v1594
        %v1655 = vadd.f32 %v1276, %v1599
        %v1656 = vadd.f32 %v1276, %v1602
        %v1657 = vadd.f32 %v1276, %v1607
        %v1658 = vadd.f32 %v1276, %v1610
        %v1659 = vadd.f32 %v1276, %v1615
        %v1660 = vadd.f32 %v1276, %v1618
        %v1661 = vadd.f32 %v1276, %v1623
        %v1662 = vadd.f32 %v1276, %v1626
        %s1663 = scalar_lea.vmem [#allocation2], 16
        %v1664 = vld [vmem:[%s1663] sm:$0xff]
        %v1665 = vld [vmem:[%s1663 + $0x8] sm:$0xff]
        %v1666 = vld [vmem:[%s1663 + $0x10] sm:$0xff]
        %v1667 = vld [vmem:[%s1663 + $0x18] sm:$0xff]
        %v1668 = vld [vmem:[%s1663 + $0x20] sm:$0xff]
        %v1669 = vld [vmem:[%s1663 + $0x28] sm:$0xff]
        %v1670 = vld [vmem:[%s1663 + $0x30] sm:$0xff]
        %v1671 = vld [vmem:[%s1663 + $0x38] sm:$0xff]
        %v1672 = vld [vmem:[%s1663 + $0x40] sm:$0xff]
        %v1673 = vld [vmem:[%s1663 + $0x48] sm:$0xff]
        %v1674 = vld [vmem:[%s1663 + $0x50] sm:$0xff]
        %v1675 = vld [vmem:[%s1663 + $0x58] sm:$0xff]
        %v1676 = vld [vmem:[%s1663 + $0x60] sm:$0xff]
        %v1677 = vld [vmem:[%s1663 + $0x68] sm:$0xff]
        %v1678 = vld [vmem:[%s1663 + $0x70] sm:$0xff]
        %v1679 = vld [vmem:[%s1663 + $0x78] sm:$0xff]
        %v1680 = vld [vmem:[%s1663 + $0x80] sm:$0xff]
        %v1681 = vld [vmem:[%s1663 + $0x88] sm:$0xff]
        %v1682 = vld [vmem:[%s1663 + $0x90] sm:$0xff]
        %v1683 = vld [vmem:[%s1663 + $0x98] sm:$0xff]
        %v1684 = vld [vmem:[%s1663 + $0xa0] sm:$0xff]
        %v1685 = vld [vmem:[%s1663 + $0xa8] sm:$0xff]
        %v1686 = vld [vmem:[%s1663 + $0xb0] sm:$0xff]
        %v1687 = vld [vmem:[%s1663 + $0xb8] sm:$0xff]
        %v1688 = vld [vmem:[%s1663 + $0xc0] sm:$0xff]
        %v1689 = vld [vmem:[%s1663 + $0xc8] sm:$0xff]
        %v1690 = vld [vmem:[%s1663 + $0xd0] sm:$0xff]
        %v1691 = vld [vmem:[%s1663 + $0xd8] sm:$0xff]
        %v1692 = vld [vmem:[%s1663 + $0xe0] sm:$0xff]
        %v1693 = vld [vmem:[%s1663 + $0xe8] sm:$0xff]
        %v1694 = vld [vmem:[%s1663 + $0xf0] sm:$0xff]
        %v1695 = vld [vmem:[%s1663 + $0xf8] sm:$0xff]
        %v1696 = vld [vmem:[%s1663 + $0x100] sm:$0xff]
        %v1697 = vld [vmem:[%s1663 + $0x108] sm:$0xff]
        %s1698 = scalar_lea.vmem %s3, 96
        %v1699 = vld [vmem:[%s1698] sm:$0xf]
        %v1700 = vld [vmem:[%s1698 + $0x4] sm:$0xf]
        %v1701 = vld [vmem:[%s1698 + $0x8] sm:$0xf]
        %v1702 = vld [vmem:[%s1698 + $0xc] sm:$0xf]
        %v1703 = vld [vmem:[%s1698 + $0x10] sm:$0xf]
        %v1704 = vld [vmem:[%s1698 + $0x14] sm:$0xf]
        %v1705 = vld [vmem:[%s1698 + $0x18] sm:$0xf]
        %v1706 = vld [vmem:[%s1698 + $0x1c] sm:$0xf]
        %v1707 = vld [vmem:[%s1698 + $0x20] sm:$0xf]
        %v1708 = vld [vmem:[%s1698 + $0x24] sm:$0xf]
        %v1709 = vld [vmem:[%s1698 + $0x28] sm:$0xf]
        %v1710 = vld [vmem:[%s1698 + $0x2c] sm:$0xf]
        %v1711 = vld [vmem:[%s1698 + $0x30] sm:$0xf]
        %v1712 = vld [vmem:[%s1698 + $0x34] sm:$0xf]
        %v1713 = vld [vmem:[%s1698 + $0x38] sm:$0xf]
        %v1714 = vld [vmem:[%s1698 + $0x3c] sm:$0xf]
        %v1715 = vld [vmem:[%s1698 + $0x40] sm:$0xf]
        %v1716 = vld [vmem:[%s1698 + $0x44] sm:$0xf]
        %v1717 = vld [vmem:[%s1698 + $0x48] sm:$0xf]
        %v1718 = vld [vmem:[%s1698 + $0x4c] sm:$0xf]
        %v1719 = vld [vmem:[%s1698 + $0x50] sm:$0xf]
        %v1720 = vld [vmem:[%s1698 + $0x54] sm:$0xf]
        %v1721 = vld [vmem:[%s1698 + $0x58] sm:$0xf]
        %v1722 = vld [vmem:[%s1698 + $0x5c] sm:$0xf]
        %v1747 = vunpack.c.l.b16 %v1699
        %v1748 = vunpack.c.l.b16 %v1700
        %v1749 = vunpack.c.l.b16 %v1701
        %v1750 = vunpack.c.l.b16 %v1702
        %v1751 = vunpack.c.l.b16 %v1703
        %v1752 = vunpack.c.l.b16 %v1704
        %v1753 = vunpack.c.l.b16 %v1705
        %v1754 = vunpack.c.l.b16 %v1706
        %v1755 = vunpack.c.l.b16 %v1707
        %v1756 = vunpack.c.l.b16 %v1708
        %v1757 = vunpack.c.l.b16 %v1709
        %v1758 = vunpack.c.l.b16 %v1710
        %v1759 = vunpack.c.l.b16 %v1711
        %v1760 = vunpack.c.l.b16 %v1712
        %v1761 = vunpack.c.l.b16 %v1713
        %v1762 = vunpack.c.l.b16 %v1714
        %v1763 = vunpack.c.l.b16 %v1715
        %v1764 = vunpack.c.l.b16 %v1716
        %v1765 = vunpack.c.l.b16 %v1717
        %v1766 = vunpack.c.l.b16 %v1718
        %v1767 = vunpack.c.l.b16 %v1719
        %v1768 = vunpack.c.l.b16 %v1720
        %v1769 = vunpack.c.l.b16 %v1721
        %v1770 = vunpack.c.l.b16 %v1722
        %v1771 = vpack.c.b16 %v1748, %v1747
        %v1772 = vpack.c.b16 %v1750, %v1749
        %v1773 = vpack.c.b16 %v1752, %v1751
        %v1774 = vpack.c.b16 %v1754, %v1753
        %v1775 = vpack.c.b16 %v1756, %v1755
        %v1776 = vpack.c.b16 %v1758, %v1757
        %v1777 = vpack.c.b16 %v1760, %v1759
        %v1778 = vpack.c.b16 %v1762, %v1761
        %v1779 = vpack.c.b16 %v1764, %v1763
        %v1780 = vpack.c.b16 %v1766, %v1765
        %v1781 = vpack.c.b16 %v1768, %v1767
        %v1782 = vpack.c.b16 %v1770, %v1769
        %v1796 = vsel %vm1408, %v1665, 0
        %v1799 = vsel %vm1408, %v1667, 0
        %v1802 = vsel %vm1408, %v1669, 0
        %v1805 = vsel %vm1408, %v1671, 0
        %v1808 = vsel %vm1408, %v1673, 0
        %v1811 = vsel %vm1408, %v1675, 0
        %v1814 = vsel %vm1408, %v1677, 0
        %v1817 = vsel %vm1408, %v1679, 0
        %v1820 = vsel %vm1408, %v1681, 0
        %v1823 = vsel %vm1408, %v1683, 0
        %v1826 = vsel %vm1408, %v1685, 0
        %v1829 = vsel %vm1408, %v1687, 0
        %v1832 = vsel %vm1408, %v1689, 0
        %v1835 = vsel %vm1408, %v1691, 0
        %v1838 = vsel %vm1408, %v1693, 0
        %v1841 = vsel %vm1408, %v1695, 0
        %v1844 = vsel %vm1408, %v1697, 0
        %1846 = vmatprep.subr.bf16.mxu0 0
        %1847 = vmatpush1.bf16.msra.mxu0 %v1771
        %1848 = vmatprep.subr.bf16.mxu0 0
        %1849 = vmatpush1.bf16.msra.mxu0 %v1772
        %1850 = vmatprep.subr.bf16.mxu0 0
        %1851 = vmatpush1.bf16.msra.mxu0 %v1773
        %1852 = vmatprep.subr.bf16.mxu0 0
        %1853 = vmatpush1.bf16.msra.mxu0 %v1774
        %1854 = vmatprep.subr.bf16.mxu0 0
        %1855 = vmatpush1.bf16.msra.mxu0 %v1775
        %1856 = vmatprep.subr.bf16.mxu0 0
        %1857 = vmatpush1.bf16.msra.mxu0 %v1776
        %1858 = vmatprep.subr.bf16.mxu0 0
        %1859 = vmatpush1.bf16.msra.mxu0 %v1777
        %1860 = vmatprep.subr.bf16.mxu0 0
        %1861 = vmatpush1.bf16.msra.mxu0 %v1778
        %1862 = vmatprep.subr.bf16.mxu0 0
        %1863 = vmatpush1.bf16.msra.mxu0 %v1779
        %1864 = vmatprep.subr.bf16.mxu0 0
        %1865 = vmatpush1.bf16.msra.mxu0 %v1780
        %1866 = vmatprep.subr.bf16.mxu0 0
        %1867 = vmatpush1.bf16.msra.mxu0 %v1781
        %1868 = vmatprep.subr.bf16.mxu0 0
        %1869 = vmatpush1.bf16.msra.mxu0 %v1782
        %1870 = vmatprep.subr.bf16.mxu0 0
        %1871 = vmatpush1.bf16.msra.mxu0 0
        %1872 = vmatprep.subr.bf16.mxu0 0
        %1873 = vmatpush1.bf16.msra.mxu0 0
        %1874 = vmatprep.subr.bf16.mxu0 0
        %1875 = vmatpush1.bf16.msra.mxu0 0
        %1876 = vmatprep.subr.bf16.mxu0 0
        %1877 = vmatpush1.bf16.msra.mxu0 0
        %1878 = vmatprep.mubr.bf16.mxu0 %v1796
        %1879 = vmatmul.mubr.bf16.gmra.mrb[0].mxu0 %v1664
        %v1880 = vpop.f32.mrb[0].mxu0
        %v1881 = vadd.f32 0.0, %v1880
        %v1882 = vpop.f32.mrb[0].mxu0
        %v1883 = vpop.f32.mrb[0].mxu0
        %v1884 = vadd.f32 0.0, %v1883
        %v1885 = vpop.f32.mrb[0].mxu0
        %1886 = vmatprep.mubr.bf16.mxu0 %v1799
        %1887 = vmatmul.mubr.bf16.gmra.mrb[0].mxu0 %v1666
        %v1888 = vpop.f32.mrb[0].mxu0
        %v1889 = vadd.f32 0.0, %v1888
        %v1890 = vpop.f32.mrb[0].mxu0
        %v1891 = vpop.f32.mrb[0].mxu0
        %v1892 = vadd.f32 0.0, %v1891
        %v1893 = vpop.f32.mrb[0].mxu0
        %1894 = vmatprep.mubr.bf16.mxu0 %v1802
        %1895 = vmatmul.mubr.bf16.gmra.mrb[0].mxu0 %v1668
        %v1896 = vpop.f32.mrb[0].mxu0
        %v1897 = vadd.f32 0.0, %v1896
        %v1898 = vpop.f32.mrb[0].mxu0
        %v1899 = vpop.f32.mrb[0].mxu0
        %v1900 = vadd.f32 0.0, %v1899
        %v1901 = vpop.f32.mrb[0].mxu0
        %1902 = vmatprep.mubr.bf16.mxu0 %v1805
        %1903 = vmatmul.mubr.bf16.gmra.mrb[0].mxu0 %v1670
        %v1904 = vpop.f32.mrb[0].mxu0
        %v1905 = vadd.f32 0.0, %v1904
        %v1906 = vpop.f32.mrb[0].mxu0
        %v1907 = vpop.f32.mrb[0].mxu0
        %v1908 = vadd.f32 0.0, %v1907
        %v1909 = vpop.f32.mrb[0].mxu0
        %1910 = vmatprep.mubr.bf16.mxu0 %v1808
        %1911 = vmatmul.mubr.bf16.gmra.mrb[0].mxu0 %v1672
        %v1912 = vpop.f32.mrb[0].mxu0
        %v1913 = vadd.f32 0.0, %v1912
        %v1914 = vpop.f32.mrb[0].mxu0
        %v1915 = vpop.f32.mrb[0].mxu0
        %v1916 = vadd.f32 0.0, %v1915
        %v1917 = vpop.f32.mrb[0].mxu0
        %1918 = vmatprep.mubr.bf16.mxu0 %v1811
        %1919 = vmatmul.mubr.bf16.gmra.mrb[0].mxu0 %v1674
        %v1920 = vpop.f32.mrb[0].mxu0
        %v1921 = vadd.f32 0.0, %v1920
        %v1922 = vpop.f32.mrb[0].mxu0
        %v1923 = vpop.f32.mrb[0].mxu0
        %v1924 = vadd.f32 0.0, %v1923
        %v1925 = vpop.f32.mrb[0].mxu0
        %1926 = vmatprep.mubr.bf16.mxu0 %v1814
        %1927 = vmatmul.mubr.bf16.gmra.mrb[0].mxu0 %v1676
        %v1928 = vpop.f32.mrb[0].mxu0
        %v1929 = vadd.f32 0.0, %v1928
        %v1930 = vpop.f32.mrb[0].mxu0
        %v1931 = vpop.f32.mrb[0].mxu0
        %v1932 = vadd.f32 0.0, %v1931
        %v1933 = vpop.f32.mrb[0].mxu0
        %1934 = vmatprep.mubr.bf16.mxu0 %v1817
        %1935 = vmatmul.mubr.bf16.gmra.mrb[0].mxu0 %v1678
        %v1936 = vpop.f32.mrb[0].mxu0
        %v1937 = vadd.f32 0.0, %v1936
        %v1938 = vpop.f32.mrb[0].mxu0
        %v1939 = vpop.f32.mrb[0].mxu0
        %v1940 = vadd.f32 0.0, %v1939
        %v1941 = vpop.f32.mrb[0].mxu0
        %1942 = vmatprep.mubr.bf16.mxu0 %v1820
        %1943 = vmatmul.mubr.bf16.gmra.mrb[0].mxu0 %v1680
        %v1944 = vpop.f32.mrb[0].mxu0
        %v1945 = vadd.f32 0.0, %v1944
        %v1946 = vpop.f32.mrb[0].mxu0
        %v1947 = vpop.f32.mrb[0].mxu0
        %v1948 = vadd.f32 0.0, %v1947
        %v1949 = vpop.f32.mrb[0].mxu0
        %1950 = vmatprep.mubr.bf16.mxu0 %v1823
        %1951 = vmatmul.mubr.bf16.gmra.mrb[0].mxu0 %v1682
        %v1952 = vpop.f32.mrb[0].mxu0
        %v1953 = vadd.f32 0.0, %v1952
        %v1954 = vpop.f32.mrb[0].mxu0
        %v1955 = vpop.f32.mrb[0].mxu0
        %v1956 = vadd.f32 0.0, %v1955
        %v1957 = vpop.f32.mrb[0].mxu0
        %1958 = vmatprep.mubr.bf16.mxu0 %v1826
        %1959 = vmatmul.mubr.bf16.gmra.mrb[0].mxu0 %v1684
        %v1960 = vpop.f32.mrb[0].mxu0
        %v1961 = vadd.f32 0.0, %v1960
        %v1962 = vpop.f32.mrb[0].mxu0
        %v1963 = vpop.f32.mrb[0].mxu0
        %v1964 = vadd.f32 0.0, %v1963
        %v1965 = vpop.f32.mrb[0].mxu0
        %1966 = vmatprep.mubr.bf16.mxu0 %v1829
        %1967 = vmatmul.mubr.bf16.gmra.mrb[0].mxu0 %v1686
        %v1968 = vpop.f32.mrb[0].mxu0
        %v1969 = vadd.f32 0.0, %v1968
        %v1970 = vpop.f32.mrb[0].mxu0
        %v1971 = vpop.f32.mrb[0].mxu0
        %v1972 = vadd.f32 0.0, %v1971
        %v1973 = vpop.f32.mrb[0].mxu0
        %1974 = vmatprep.mubr.bf16.mxu0 %v1832
        %1975 = vmatmul.mubr.bf16.gmra.mrb[0].mxu0 %v1688
        %v1976 = vpop.f32.mrb[0].mxu0
        %v1977 = vadd.f32 0.0, %v1976
        %v1978 = vpop.f32.mrb[0].mxu0
        %v1979 = vpop.f32.mrb[0].mxu0
        %v1980 = vadd.f32 0.0, %v1979
        %v1981 = vpop.f32.mrb[0].mxu0
        %1982 = vmatprep.mubr.bf16.mxu0 %v1835
        %1983 = vmatmul.mubr.bf16.gmra.mrb[0].mxu0 %v1690
        %v1984 = vpop.f32.mrb[0].mxu0
        %v1985 = vadd.f32 0.0, %v1984
        %v1986 = vpop.f32.mrb[0].mxu0
        %v1987 = vpop.f32.mrb[0].mxu0
        %v1988 = vadd.f32 0.0, %v1987
        %v1989 = vpop.f32.mrb[0].mxu0
        %1990 = vmatprep.mubr.bf16.mxu0 %v1838
        %1991 = vmatmul.mubr.bf16.gmra.mrb[0].mxu0 %v1692
        %v1992 = vpop.f32.mrb[0].mxu0
        %v1993 = vadd.f32 0.0, %v1992
        %v1994 = vpop.f32.mrb[0].mxu0
        %v1995 = vpop.f32.mrb[0].mxu0
        %v1996 = vadd.f32 0.0, %v1995
        %v1997 = vpop.f32.mrb[0].mxu0
        %1998 = vmatprep.mubr.bf16.mxu0 %v1841
        %1999 = vmatmul.mubr.bf16.gmra.mrb[0].mxu0 %v1694
        %v2000 = vpop.f32.mrb[0].mxu0
        %v2001 = vadd.f32 0.0, %v2000
        %v2002 = vpop.f32.mrb[0].mxu0
        %v2003 = vpop.f32.mrb[0].mxu0
        %v2004 = vadd.f32 0.0, %v2003
        %v2005 = vpop.f32.mrb[0].mxu0
        %2006 = vmatprep.mubr.bf16.mxu0 %v1844
        %2007 = vmatmul.mubr.bf16.gmra.mrb[0].mxu0 %v1696
        %v2008 = vpop.f32.mrb[0].mxu0
        %v2009 = vadd.f32 0.0, %v2008
        %v2010 = vpop.f32.mrb[0].mxu0
        %v2011 = vpop.f32.mrb[0].mxu0
        %v2012 = vadd.f32 0.0, %v2011
        %v2013 = vpop.f32.mrb[0].mxu0
        %2014 = vdwg.mxu0
        %v2015 = vadd.f32 %v1629, %v1881
        %v2016 = vadd.f32 %v1630, %v1884
        %v2017 = vadd.f32 %v1631, %v1889
        %v2018 = vadd.f32 %v1632, %v1892
        %v2019 = vadd.f32 %v1633, %v1897
        %v2020 = vadd.f32 %v1634, %v1900
        %v2021 = vadd.f32 %v1635, %v1905
        %v2022 = vadd.f32 %v1636, %v1908
        %v2023 = vadd.f32 %v1637, %v1913
        %v2024 = vadd.f32 %v1638, %v1916
        %v2025 = vadd.f32 %v1639, %v1921
        %v2026 = vadd.f32 %v1640, %v1924
        %v2027 = vadd.f32 %v1641, %v1929
        %v2028 = vadd.f32 %v1642, %v1932
        %v2029 = vadd.f32 %v1643, %v1937
        %v2030 = vadd.f32 %v1644, %v1940
        %v2031 = vadd.f32 %v1645, %v1945
        %v2032 = vadd.f32 %v1646, %v1948
        %v2033 = vadd.f32 %v1647, %v1953
        %v2034 = vadd.f32 %v1648, %v1956
        %v2035 = vadd.f32 %v1649, %v1961
        %v2036 = vadd.f32 %v1650, %v1964
        %v2037 = vadd.f32 %v1651, %v1969
        %v2038 = vadd.f32 %v1652, %v1972
        %v2039 = vadd.f32 %v1653, %v1977
        %v2040 = vadd.f32 %v1654, %v1980
        %v2041 = vadd.f32 %v1655, %v1985
        %v2042 = vadd.f32 %v1656, %v1988
        %v2043 = vadd.f32 %v1657, %v1993
        %v2044 = vadd.f32 %v1658, %v1996
        %v2045 = vadd.f32 %v1659, %v2001
        %v2046 = vadd.f32 %v1660, %v2004
        %v2047 = vadd.f32 %v1661, %v2009
        %v2048 = vadd.f32 %v1662, %v2012
        %s2049 = scalar_lea.vmem [#allocation2], 32
        %v2050 = vld [vmem:[%s2049] sm:$0xff]
        %v2051 = vld [vmem:[%s2049 + $0x8] sm:$0xff]
        %v2052 = vld [vmem:[%s2049 + $0x10] sm:$0xff]
        %v2053 = vld [vmem:[%s2049 + $0x18] sm:$0xff]
        %v2054 = vld [vmem:[%s2049 + $0x20] sm:$0xff]
        %v2055 = vld [vmem:[%s2049 + $0x28] sm:$0xff]
        %v2056 = vld [vmem:[%s2049 + $0x30] sm:$0xff]
        %v2057 = vld [vmem:[%s2049 + $0x38] sm:$0xff]
        %v2058 = vld [vmem:[%s2049 + $0x40] sm:$0xff]
        %v2059 = vld [vmem:[%s2049 + $0x48] sm:$0xff]
        %v2060 = vld [vmem:[%s2049 + $0x50] sm:$0xff]
        %v2061 = vld [vmem:[%s2049 + $0x58] sm:$0xff]
        %v2062 = vld [vmem:[%s2049 + $0x60] sm:$0xff]
        %v2063 = vld [vmem:[%s2049 + $0x68] sm:$0xff]
        %v2064 = vld [vmem:[%s2049 + $0x70] sm:$0xff]
        %v2065 = vld [vmem:[%s2049 + $0x78] sm:$0xff]
        %v2066 = vld [vmem:[%s2049 + $0x80] sm:$0xff]
        %v2067 = vld [vmem:[%s2049 + $0x88] sm:$0xff]
        %v2068 = vld [vmem:[%s2049 + $0x90] sm:$0xff]
        %v2069 = vld [vmem:[%s2049 + $0x98] sm:$0xff]
        %v2070 = vld [vmem:[%s2049 + $0xa0] sm:$0xff]
        %v2071 = vld [vmem:[%s2049 + $0xa8] sm:$0xff]
        %v2072 = vld [vmem:[%s2049 + $0xb0] sm:$0xff]
        %v2073 = vld [vmem:[%s2049 + $0xb8] sm:$0xff]
        %v2074 = vld [vmem:[%s2049 + $0xc0] sm:$0xff]
        %v2075 = vld [vmem:[%s2049 + $0xc8] sm:$0xff]
        %v2076 = vld [vmem:[%s2049 + $0xd0] sm:$0xff]
        %v2077 = vld [vmem:[%s2049 + $0xd8] sm:$0xff]
        %v2078 = vld [vmem:[%s2049 + $0xe0] sm:$0xff]
        %v2079 = vld [vmem:[%s2049 + $0xe8] sm:$0xff]
        %v2080 = vld [vmem:[%s2049 + $0xf0] sm:$0xff]
        %v2081 = vld [vmem:[%s2049 + $0xf8] sm:$0xff]
        %v2082 = vld [vmem:[%s2049 + $0x100] sm:$0xff]
        %v2083 = vld [vmem:[%s2049 + $0x108] sm:$0xff]
        %s2084 = scalar_lea.vmem %s3, 192
        %v2085 = vld [vmem:[%s2084] sm:$0xf]
        %v2086 = vld [vmem:[%s2084 + $0x4] sm:$0xf]
        %v2087 = vld [vmem:[%s2084 + $0x8] sm:$0xf]
        %v2088 = vld [vmem:[%s2084 + $0xc] sm:$0xf]
        %v2089 = vld [vmem:[%s2084 + $0x10] sm:$0xf]
        %v2090 = vld [vmem:[%s2084 + $0x14] sm:$0xf]
        %v2091 = vld [vmem:[%s2084 + $0x18] sm:$0xf]
        %v2092 = vld [vmem:[%s2084 + $0x1c] sm:$0xf]
        %v2093 = vld [vmem:[%s2084 + $0x20] sm:$0xf]
        %v2094 = vld [vmem:[%s2084 + $0x24] sm:$0xf]
        %v2095 = vld [vmem:[%s2084 + $0x28] sm:$0xf]
        %v2096 = vld [vmem:[%s2084 + $0x2c] sm:$0xf]
        %v2097 = vld [vmem:[%s2084 + $0x30] sm:$0xf]
        %v2098 = vld [vmem:[%s2084 + $0x34] sm:$0xf]
        %v2099 = vld [vmem:[%s2084 + $0x38] sm:$0xf]
        %v2100 = vld [vmem:[%s2084 + $0x3c] sm:$0xf]
        %v2101 = vld [vmem:[%s2084 + $0x40] sm:$0xf]
        %v2102 = vld [vmem:[%s2084 + $0x44] sm:$0xf]
        %v2103 = vld [vmem:[%s2084 + $0x48] sm:$0xf]
        %v2104 = vld [vmem:[%s2084 + $0x4c] sm:$0xf]
        %v2105 = vld [vmem:[%s2084 + $0x50] sm:$0xf]
        %v2106 = vld [vmem:[%s2084 + $0x54] sm:$0xf]
        %v2107 = vld [vmem:[%s2084 + $0x58] sm:$0xf]
        %v2108 = vld [vmem:[%s2084 + $0x5c] sm:$0xf]
        %v2133 = vunpack.c.l.b16 %v2085
        %v2134 = vunpack.c.l.b16 %v2086
        %v2135 = vunpack.c.l.b16 %v2087
        %v2136 = vunpack.c.l.b16 %v2088
        %v2137 = vunpack.c.l.b16 %v2089
        %v2138 = vunpack.c.l.b16 %v2090
        %v2139 = vunpack.c.l.b16 %v2091
        %v2140 = vunpack.c.l.b16 %v2092
        %v2141 = vunpack.c.l.b16 %v2093
        %v2142 = vunpack.c.l.b16 %v2094
        %v2143 = vunpack.c.l.b16 %v2095
        %v2144 = vunpack.c.l.b16 %v2096
        %v2145 = vunpack.c.l.b16 %v2097
        %v2146 = vunpack.c.l.b16 %v2098
        %v2147 = vunpack.c.l.b16 %v2099
        %v2148 = vunpack.c.l.b16 %v2100
        %v2149 = vunpack.c.l.b16 %v2101
        %v2150 = vunpack.c.l.b16 %v2102
        %v2151 = vunpack.c.l.b16 %v2103
        %v2152 = vunpack.c.l.b16 %v2104
        %v2153 = vunpack.c.l.b16 %v2105
        %v2154 = vunpack.c.l.b16 %v2106
        %v2155 = vunpack.c.l.b16 %v2107
        %v2156 = vunpack.c.l.b16 %v2108
        %v2157 = vpack.c.b16 %v2134, %v2133
        %v2158 = vpack.c.b16 %v2136, %v2135
        %v2159 = vpack.c.b16 %v2138, %v2137
        %v2160 = vpack.c.b16 %v2140, %v2139
        %v2161 = vpack.c.b16 %v2142, %v2141
        %v2162 = vpack.c.b16 %v2144, %v2143
        %v2163 = vpack.c.b16 %v2146, %v2145
        %v2164 = vpack.c.b16 %v2148, %v2147
        %v2165 = vpack.c.b16 %v2150, %v2149
        %v2166 = vpack.c.b16 %v2152, %v2151
        %v2167 = vpack.c.b16 %v2154, %v2153
        %v2168 = vpack.c.b16 %v2156, %v2155
        %v2182 = vsel %vm1408, %v2051, 0
        %v2185 = vsel %vm1408, %v2053, 0
        %v2188 = vsel %vm1408, %v2055, 0
        %v2191 = vsel %vm1408, %v2057, 0
        %v2194 = vsel %vm1408, %v2059, 0
        %v2197 = vsel %vm1408, %v2061, 0
        %v2200 = vsel %vm1408, %v2063, 0
        %v2203 = vsel %vm1408, %v2065, 0
        %v2206 = vsel %vm1408, %v2067, 0
        %v2209 = vsel %vm1408, %v2069, 0
        %v2212 = vsel %vm1408, %v2071, 0
        %v2215 = vsel %vm1408, %v2073, 0
        %v2218 = vsel %vm1408, %v2075, 0
        %v2221 = vsel %vm1408, %v2077, 0
        %v2224 = vsel %vm1408, %v2079, 0
        %v2227 = vsel %vm1408, %v2081, 0
        %v2230 = vsel %vm1408, %v2083, 0
        %2232 = vmatprep.subr.bf16.mxu0 0
        %2233 = vmatpush1.bf16.msra.mxu0 %v2157
        %2234 = vmatprep.subr.bf16.mxu0 0
        %2235 = vmatpush1.bf16.msra.mxu0 %v2158
        %2236 = vmatprep.subr.bf16.mxu0 0
        %2237 = vmatpush1.bf16.msra.mxu0 %v2159
        %2238 = vmatprep.subr.bf16.mxu0 0
        %2239 = vmatpush1.bf16.msra.mxu0 %v2160
        %2240 = vmatprep.subr.bf16.mxu0 0
        %2241 = vmatpush1.bf16.msra.mxu0 %v2161
        %2242 = vmatprep.subr.bf16.mxu0 0
        %2243 = vmatpush1.bf16.msra.mxu0 %v2162
        %2244 = vmatprep.subr.bf16.mxu0 0
        %2245 = vmatpush1.bf16.msra.mxu0 %v2163
        %2246 = vmatprep.subr.bf16.mxu0 0
        %2247 = vmatpush1.bf16.msra.mxu0 %v2164
        %2248 = vmatprep.subr.bf16.mxu0 0
        %2249 = vmatpush1.bf16.msra.mxu0 %v2165
        %2250 = vmatprep.subr.bf16.mxu0 0
        %2251 = vmatpush1.bf16.msra.mxu0 %v2166
        %2252 = vmatprep.subr.bf16.mxu0 0
        %2253 = vmatpush1.bf16.msra.mxu0 %v2167
        %2254 = vmatprep.subr.bf16.mxu0 0
        %2255 = vmatpush1.bf16.msra.mxu0 %v2168
        %2256 = vmatprep.subr.bf16.mxu0 0
        %2257 = vmatpush1.bf16.msra.mxu0 0
        %2258 = vmatprep.subr.bf16.mxu0 0
        %2259 = vmatpush1.bf16.msra.mxu0 0
        %2260 = vmatprep.subr.bf16.mxu0 0
        %2261 = vmatpush1.bf16.msra.mxu0 0
        %2262 = vmatprep.subr.bf16.mxu0 0
        %2263 = vmatpush1.bf16.msra.mxu0 0
        %2264 = vmatprep.mubr.bf16.mxu0 %v2182
        %2265 = vmatmul.mubr.bf16.gmra.mrb[0].mxu0 %v2050
        %v2266 = vpop.f32.mrb[0].mxu0
        %v2267 = vadd.f32 0.0, %v2266
        %v2268 = vpop.f32.mrb[0].mxu0
        %v2269 = vpop.f32.mrb[0].mxu0
        %v2270 = vadd.f32 0.0, %v2269
        %v2271 = vpop.f32.mrb[0].mxu0
        %2272 = vmatprep.mubr.bf16.mxu0 %v2185
        %2273 = vmatmul.mubr.bf16.gmra.mrb[0].mxu0 %v2052
        %v2274 = vpop.f32.mrb[0].mxu0
        %v2275 = vadd.f32 0.0, %v2274
        %v2276 = vpop.f32.mrb[0].mxu0
        %v2277 = vpop.f32.mrb[0].mxu0
        %v2278 = vadd.f32 0.0, %v2277
        %v2279 = vpop.f32.mrb[0].mxu0
        %2280 = vmatprep.mubr.bf16.mxu0 %v2188
        %2281 = vmatmul.mubr.bf16.gmra.mrb[0].mxu0 %v2054
        %v2282 = vpop.f32.mrb[0].mxu0
        %v2283 = vadd.f32 0.0, %v2282
        %v2284 = vpop.f32.mrb[0].mxu0
        %v2285 = vpop.f32.mrb[0].mxu0
        %v2286 = vadd.f32 0.0, %v2285
        %v2287 = vpop.f32.mrb[0].mxu0
        %2288 = vmatprep.mubr.bf16.mxu0 %v2191
        %2289 = vmatmul.mubr.bf16.gmra.mrb[0].mxu0 %v2056
        %v2290 = vpop.f32.mrb[0].mxu0
        %v2291 = vadd.f32 0.0, %v2290
        %v2292 = vpop.f32.mrb[0].mxu0
        %v2293 = vpop.f32.mrb[0].mxu0
        %v2294 = vadd.f32 0.0, %v2293
        %v2295 = vpop.f32.mrb[0].mxu0
        %2296 = vmatprep.mubr.bf16.mxu0 %v2194
        %2297 = vmatmul.mubr.bf16.gmra.mrb[0].mxu0 %v2058
        %v2298 = vpop.f32.mrb[0].mxu0
        %v2299 = vadd.f32 0.0, %v2298
        %v2300 = vpop.f32.mrb[0].mxu0
        %v2301 = vpop.f32.mrb[0].mxu0
        %v2302 = vadd.f32 0.0, %v2301
        %v2303 = vpop.f32.mrb[0].mxu0
        %2304 = vmatprep.mubr.bf16.mxu0 %v2197
        %2305 = vmatmul.mubr.bf16.gmra.mrb[0].mxu0 %v2060
        %v2306 = vpop.f32.mrb[0].mxu0
        %v2307 = vadd.f32 0.0, %v2306
        %v2308 = vpop.f32.mrb[0].mxu0
        %v2309 = vpop.f32.mrb[0].mxu0
        %v2310 = vadd.f32 0.0, %v2309
        %v2311 = vpop.f32.mrb[0].mxu0
        %2312 = vmatprep.mubr.bf16.mxu0 %v2200
        %2313 = vmatmul.mubr.bf16.gmra.mrb[0].mxu0 %v2062
        %v2314 = vpop.f32.mrb[0].mxu0
        %v2315 = vadd.f32 0.0, %v2314
        %v2316 = vpop.f32.mrb[0].mxu0
        %v2317 = vpop.f32.mrb[0].mxu0
        %v2318 = vadd.f32 0.0, %v2317
        %v2319 = vpop.f32.mrb[0].mxu0
        %2320 = vmatprep.mubr.bf16.mxu0 %v2203
        %2321 = vmatmul.mubr.bf16.gmra.mrb[0].mxu0 %v2064
        %v2322 = vpop.f32.mrb[0].mxu0
        %v2323 = vadd.f32 0.0, %v2322
        %v2324 = vpop.f32.mrb[0].mxu0
        %v2325 = vpop.f32.mrb[0].mxu0
        %v2326 = vadd.f32 0.0, %v2325
        %v2327 = vpop.f32.mrb[0].mxu0
        %2328 = vmatprep.mubr.bf16.mxu0 %v2206
        %2329 = vmatmul.mubr.bf16.gmra.mrb[0].mxu0 %v2066
        %v2330 = vpop.f32.mrb[0].mxu0
        %v2331 = vadd.f32 0.0, %v2330
        %v2332 = vpop.f32.mrb[0].mxu0
        %v2333 = vpop.f32.mrb[0].mxu0
        %v2334 = vadd.f32 0.0, %v2333
        %v2335 = vpop.f32.mrb[0].mxu0
        %2336 = vmatprep.mubr.bf16.mxu0 %v2209
        %2337 = vmatmul.mubr.bf16.gmra.mrb[0].mxu0 %v2068
        %v2338 = vpop.f32.mrb[0].mxu0
        %v2339 = vadd.f32 0.0, %v2338
        %v2340 = vpop.f32.mrb[0].mxu0
        %v2341 = vpop.f32.mrb[0].mxu0
        %v2342 = vadd.f32 0.0, %v2341
        %v2343 = vpop.f32.mrb[0].mxu0
        %2344 = vmatprep.mubr.bf16.mxu0 %v2212
        %2345 = vmatmul.mubr.bf16.gmra.mrb[0].mxu0 %v2070
        %v2346 = vpop.f32.mrb[0].mxu0
        %v2347 = vadd.f32 0.0, %v2346
        %v2348 = vpop.f32.mrb[0].mxu0
        %v2349 = vpop.f32.mrb[0].mxu0
        %v2350 = vadd.f32 0.0, %v2349
        %v2351 = vpop.f32.mrb[0].mxu0
        %2352 = vmatprep.mubr.bf16.mxu0 %v2215
        %2353 = vmatmul.mubr.bf16.gmra.mrb[0].mxu0 %v2072
        %v2354 = vpop.f32.mrb[0].mxu0
        %v2355 = vadd.f32 0.0, %v2354
        %v2356 = vpop.f32.mrb[0].mxu0
        %v2357 = vpop.f32.mrb[0].mxu0
        %v2358 = vadd.f32 0.0, %v2357
        %v2359 = vpop.f32.mrb[0].mxu0
        %2360 = vmatprep.mubr.bf16.mxu0 %v2218
        %2361 = vmatmul.mubr.bf16.gmra.mrb[0].mxu0 %v2074
        %v2362 = vpop.f32.mrb[0].mxu0
        %v2363 = vadd.f32 0.0, %v2362
        %v2364 = vpop.f32.mrb[0].mxu0
        %v2365 = vpop.f32.mrb[0].mxu0
        %v2366 = vadd.f32 0.0, %v2365
        %v2367 = vpop.f32.mrb[0].mxu0
        %2368 = vmatprep.mubr.bf16.mxu0 %v2221
        %2369 = vmatmul.mubr.bf16.gmra.mrb[0].mxu0 %v2076
        %v2370 = vpop.f32.mrb[0].mxu0
        %v2371 = vadd.f32 0.0, %v2370
        %v2372 = vpop.f32.mrb[0].mxu0
        %v2373 = vpop.f32.mrb[0].mxu0
        %v2374 = vadd.f32 0.0, %v2373
        %v2375 = vpop.f32.mrb[0].mxu0
        %2376 = vmatprep.mubr.bf16.mxu0 %v2224
        %2377 = vmatmul.mubr.bf16.gmra.mrb[0].mxu0 %v2078
        %v2378 = vpop.f32.mrb[0].mxu0
        %v2379 = vadd.f32 0.0, %v2378
        %v2380 = vpop.f32.mrb[0].mxu0
        %v2381 = vpop.f32.mrb[0].mxu0
        %v2382 = vadd.f32 0.0, %v2381
        %v2383 = vpop.f32.mrb[0].mxu0
        %2384 = vmatprep.mubr.bf16.mxu0 %v2227
        %2385 = vmatmul.mubr.bf16.gmra.mrb[0].mxu0 %v2080
        %v2386 = vpop.f32.mrb[0].mxu0
        %v2387 = vadd.f32 0.0, %v2386
        %v2388 = vpop.f32.mrb[0].mxu0
        %v2389 = vpop.f32.mrb[0].mxu0
        %v2390 = vadd.f32 0.0, %v2389
        %v2391 = vpop.f32.mrb[0].mxu0
        %2392 = vmatprep.mubr.bf16.mxu0 %v2230
        %2393 = vmatmul.mubr.bf16.gmra.mrb[0].mxu0 %v2082
        %v2394 = vpop.f32.mrb[0].mxu0
        %v2395 = vadd.f32 0.0, %v2394
        %v2396 = vpop.f32.mrb[0].mxu0
        %v2397 = vpop.f32.mrb[0].mxu0
        %v2398 = vadd.f32 0.0, %v2397
        %v2399 = vpop.f32.mrb[0].mxu0
        %2400 = vdwg.mxu0
        %v2401 = vadd.f32 %v2015, %v2267
        %v2402 = vadd.f32 %v2016, %v2270
        %v2403 = vadd.f32 %v2017, %v2275
        %v2404 = vadd.f32 %v2018, %v2278
        %v2405 = vadd.f32 %v2019, %v2283
        %v2406 = vadd.f32 %v2020, %v2286
        %v2407 = vadd.f32 %v2021, %v2291
        %v2408 = vadd.f32 %v2022, %v2294
        %v2409 = vadd.f32 %v2023, %v2299
        %v2410 = vadd.f32 %v2024, %v2302
        %v2411 = vadd.f32 %v2025, %v2307
        %v2412 = vadd.f32 %v2026, %v2310
        %v2413 = vadd.f32 %v2027, %v2315
        %v2414 = vadd.f32 %v2028, %v2318
        %v2415 = vadd.f32 %v2029, %v2323
        %v2416 = vadd.f32 %v2030, %v2326
        %v2417 = vadd.f32 %v2031, %v2331
        %v2418 = vadd.f32 %v2032, %v2334
        %v2419 = vadd.f32 %v2033, %v2339
        %v2420 = vadd.f32 %v2034, %v2342
        %v2421 = vadd.f32 %v2035, %v2347
        %v2422 = vadd.f32 %v2036, %v2350
        %v2423 = vadd.f32 %v2037, %v2355
        %v2424 = vadd.f32 %v2038, %v2358
        %v2425 = vadd.f32 %v2039, %v2363
        %v2426 = vadd.f32 %v2040, %v2366
        %v2427 = vadd.f32 %v2041, %v2371
        %v2428 = vadd.f32 %v2042, %v2374
        %v2429 = vadd.f32 %v2043, %v2379
        %v2430 = vadd.f32 %v2044, %v2382
        %v2431 = vadd.f32 %v2045, %v2387
        %v2432 = vadd.f32 %v2046, %v2390
        %v2433 = vadd.f32 %v2047, %v2395
        %v2434 = vadd.f32 %v2048, %v2398
        %v2435 = vmax.f32 %v2401, 0.0
        %v2436 = vmax.f32 %v2402, 0.0
        %v2437 = vmax.f32 %v2403, 0.0
        %v2438 = vmax.f32 %v2404, 0.0
        %v2439 = vmax.f32 %v2405, 0.0
        %v2440 = vmax.f32 %v2406, 0.0
        %v2441 = vmax.f32 %v2407, 0.0
        %v2442 = vmax.f32 %v2408, 0.0
        %v2443 = vmax.f32 %v2409, 0.0
        %v2444 = vmax.f32 %v2410, 0.0
        %v2445 = vmax.f32 %v2411, 0.0
        %v2446 = vmax.f32 %v2412, 0.0
        %v2447 = vmax.f32 %v2413, 0.0
        %v2448 = vmax.f32 %v2414, 0.0
        %v2449 = vmax.f32 %v2415, 0.0
        %v2450 = vmax.f32 %v2416, 0.0
        %v2451 = vmax.f32 %v2417, 0.0
        %v2452 = vmax.f32 %v2418, 0.0
        %v2453 = vmax.f32 %v2419, 0.0
        %v2454 = vmax.f32 %v2420, 0.0
        %v2455 = vmax.f32 %v2421, 0.0
        %v2456 = vmax.f32 %v2422, 0.0
        %v2457 = vmax.f32 %v2423, 0.0
        %v2458 = vmax.f32 %v2424, 0.0
        %v2459 = vmax.f32 %v2425, 0.0
        %v2460 = vmax.f32 %v2426, 0.0
        %v2461 = vmax.f32 %v2427, 0.0
        %v2462 = vmax.f32 %v2428, 0.0
        %v2463 = vmax.f32 %v2429, 0.0
        %v2464 = vmax.f32 %v2430, 0.0
        %v2465 = vmax.f32 %v2431, 0.0
        %v2466 = vmax.f32 %v2432, 0.0
        %v2467 = vmax.f32 %v2433, 0.0
        %v2468 = vmax.f32 %v2434, 0.0
        %2469 = vst.msk [vmem:[#allocation3] sm:$0xff] %vm1408, %v2435
        %2470 = vst.msk [vmem:[#allocation3 + $0x8] sm:$0xff] %vm1408, %v2436
        %2471 = vst.msk [vmem:[#allocation3 + $0x10] sm:$0xff] %vm1408, %v2437
        %2472 = vst.msk [vmem:[#allocation3 + $0x18] sm:$0xff] %vm1408, %v2438
        %2473 = vst.msk [vmem:[#allocation3 + $0x20] sm:$0xff] %vm1408, %v2439
        %2474 = vst.msk [vmem:[#allocation3 + $0x28] sm:$0xff] %vm1408, %v2440
        %2475 = vst.msk [vmem:[#allocation3 + $0x30] sm:$0xff] %vm1408, %v2441
        %2476 = vst.msk [vmem:[#allocation3 + $0x38] sm:$0xff] %vm1408, %v2442
        %2477 = vst.msk [vmem:[#allocation3 + $0x40] sm:$0xff] %vm1408, %v2443
        %2478 = vst.msk [vmem:[#allocation3 + $0x48] sm:$0xff] %vm1408, %v2444
        %2479 = vst.msk [vmem:[#allocation3 + $0x50] sm:$0xff] %vm1408, %v2445
        %2480 = vst.msk [vmem:[#allocation3 + $0x58] sm:$0xff] %vm1408, %v2446
        %2481 = vst.msk [vmem:[#allocation3 + $0x60] sm:$0xff] %vm1408, %v2447
        %2482 = vst.msk [vmem:[#allocation3 + $0x68] sm:$0xff] %vm1408, %v2448
        %2483 = vst.msk [vmem:[#allocation3 + $0x70] sm:$0xff] %vm1408, %v2449
        %2484 = vst.msk [vmem:[#allocation3 + $0x78] sm:$0xff] %vm1408, %v2450
        %2485 = vst.msk [vmem:[#allocation3 + $0x80] sm:$0xff] %vm1408, %v2451
        %2486 = vst.msk [vmem:[#allocation3 + $0x88] sm:$0xff] %vm1408, %v2452
        %2487 = vst.msk [vmem:[#allocation3 + $0x90] sm:$0xff] %vm1408, %v2453
        %2488 = vst.msk [vmem:[#allocation3 + $0x98] sm:$0xff] %vm1408, %v2454
        %2489 = vst.msk [vmem:[#allocation3 + $0xa0] sm:$0xff] %vm1408, %v2455
        %2490 = vst.msk [vmem:[#allocation3 + $0xa8] sm:$0xff] %vm1408, %v2456
        %2491 = vst.msk [vmem:[#allocation3 + $0xb0] sm:$0xff] %vm1408, %v2457
        %2492 = vst.msk [vmem:[#allocation3 + $0xb8] sm:$0xff] %vm1408, %v2458
        %2493 = vst.msk [vmem:[#allocation3 + $0xc0] sm:$0xff] %vm1408, %v2459
        %2494 = vst.msk [vmem:[#allocation3 + $0xc8] sm:$0xff] %vm1408, %v2460
        %2495 = vst.msk [vmem:[#allocation3 + $0xd0] sm:$0xff] %vm1408, %v2461
        %2496 = vst.msk [vmem:[#allocation3 + $0xd8] sm:$0xff] %vm1408, %v2462
        %2497 = vst.msk [vmem:[#allocation3 + $0xe0] sm:$0xff] %vm1408, %v2463
        %2498 = vst.msk [vmem:[#allocation3 + $0xe8] sm:$0xff] %vm1408, %v2464
        %2499 = vst.msk [vmem:[#allocation3 + $0xf0] sm:$0xff] %vm1408, %v2465
        %2500 = vst.msk [vmem:[#allocation3 + $0xf8] sm:$0xff] %vm1408, %v2466
        %2501 = vst.msk [vmem:[#allocation3 + $0x100] sm:$0xff] %vm1408, %v2467
        %2502 = vst.msk [vmem:[#allocation3 + $0x108] sm:$0xff] %vm1408, %v2468
        // Predicated region
        $region45: #{tpu_custom_call.1} parent=39 // pred_check
          %p2503 = pneg %p1259
        $region46: #{tpu_custom_call.1} parent=39 // pred_check_branch
          %2505 = sbr.rel (%p2503) target = $region48
        $region47: #{tpu_custom_call.1} parent=39 // pred_region
          %2506 = vst.msk [vmem:[#allocation3] sm:$0xff] %vm1408, 0.0
          %2507 = vst.msk [vmem:[#allocation3 + $0x8] sm:$0xff] %vm1408, 0.0
        $region48: #{tpu_custom_call.1} parent=39 // pred_fallthru
          _
        %v2508 = vld [vmem:[#allocation3] ss:$2 sm:$0xff]
        %s2509 = scalar_lea.vmem [#allocation3], 16
        %v2510 = vld [vmem:[%s2509] ss:$2 sm:$0xff]
        %s2511 = scalar_lea.vmem [#allocation3], 32
        %v2512 = vld [vmem:[%s2511] ss:$2 sm:$0xff]
        %s2513 = scalar_lea.vmem [#allocation3], 48
        %v2514 = vld [vmem:[%s2513] ss:$2 sm:$0xff]
        %s2515 = scalar_lea.vmem [#allocation3], 64
        %v2516 = vld [vmem:[%s2515] ss:$2 sm:$0xff]
        %s2517 = scalar_lea.vmem [#allocation3], 80
        %v2518 = vld [vmem:[%s2517] ss:$2 sm:$0xff]
        %s2519 = scalar_lea.vmem [#allocation3], 96
        %v2520 = vld [vmem:[%s2519] ss:$2 sm:$0xff]
        %s2521 = scalar_lea.vmem [#allocation3], 112
        %v2522 = vld [vmem:[%s2521] ss:$2 sm:$0xff]
        %s2523 = scalar_lea.vmem [#allocation3], 128
        %v2524 = vld [vmem:[%s2523] ss:$2 sm:$0xff]
        %s2525 = scalar_lea.vmem [#allocation3], 144
        %v2526 = vld [vmem:[%s2525] ss:$2 sm:$0xff]
        %s2527 = scalar_lea.vmem [#allocation3], 160
        %v2528 = vld [vmem:[%s2527] ss:$2 sm:$0xff]
        %s2529 = scalar_lea.vmem [#allocation3], 176
        %v2530 = vld [vmem:[%s2529] ss:$2 sm:$0xff]
        %s2531 = scalar_lea.vmem [#allocation3], 192
        %v2532 = vld [vmem:[%s2531] ss:$2 sm:$0xff]
        %s2533 = scalar_lea.vmem [#allocation3], 208
        %v2534 = vld [vmem:[%s2533] ss:$2 sm:$0xff]
        %s2535 = scalar_lea.vmem [#allocation3], 224
        %v2536 = vld [vmem:[%s2535] ss:$2 sm:$0xff]
        %s2537 = scalar_lea.vmem [#allocation3], 240
        %v2538 = vld [vmem:[%s2537] ss:$2 sm:$0xff]
        %s2539 = scalar_lea.vmem [#allocation3], 256
        %v2540 = vld [vmem:[%s2539] ss:$2 sm:$0xff]
        %s2541 = scalar_lea.vmem [#allocation3], 1
        %v2542 = vld [vmem:[%s2541] ss:$2 sm:$0xff]
        %s2543 = scalar_lea.vmem [#allocation3], 17
        %v2544 = vld [vmem:[%s2543] ss:$2 sm:$0xff]
        %s2545 = scalar_lea.vmem [#allocation3], 33
        %v2546 = vld [vmem:[%s2545] ss:$2 sm:$0xff]
        %s2547 = scalar_lea.vmem [#allocation3], 49
        %v2548 = vld [vmem:[%s2547] ss:$2 sm:$0xff]
        %s2549 = scalar_lea.vmem [#allocation3], 65
        %v2550 = vld [vmem:[%s2549] ss:$2 sm:$0xff]
        %s2551 = scalar_lea.vmem [#allocation3], 81
        %v2552 = vld [vmem:[%s2551] ss:$2 sm:$0xff]
        %s2553 = scalar_lea.vmem [#allocation3], 97
        %v2554 = vld [vmem:[%s2553] ss:$2 sm:$0xff]
        %s2555 = scalar_lea.vmem [#allocation3], 113
        %v2556 = vld [vmem:[%s2555] ss:$2 sm:$0xff]
        %s2557 = scalar_lea.vmem [#allocation3], 129
        %v2558 = vld [vmem:[%s2557] ss:$2 sm:$0xff]
        %s2559 = scalar_lea.vmem [#allocation3], 145
        %v2560 = vld [vmem:[%s2559] ss:$2 sm:$0xff]
        %s2561 = scalar_lea.vmem [#allocation3], 161
        %v2562 = vld [vmem:[%s2561] ss:$2 sm:$0xff]
        %s2563 = scalar_lea.vmem [#allocation3], 177
        %v2564 = vld [vmem:[%s2563] ss:$2 sm:$0xff]
        %s2565 = scalar_lea.vmem [#allocation3], 193
        %v2566 = vld [vmem:[%s2565] ss:$2 sm:$0xff]
        %s2567 = scalar_lea.vmem [#allocation3], 209
        %v2568 = vld [vmem:[%s2567] ss:$2 sm:$0xff]
        %s2569 = scalar_lea.vmem [#allocation3], 225
        %v2570 = vld [vmem:[%s2569] ss:$2 sm:$0xff]
        %s2571 = scalar_lea.vmem [#allocation3], 241
        %v2572 = vld [vmem:[%s2571] ss:$2 sm:$0xff]
        %s2573 = scalar_lea.vmem [#allocation3], 257
        %v2574 = vld [vmem:[%s2573] ss:$2 sm:$0xff]
        %v2575 = vld [vmem:[%s2541] ss:$2 sm:$0x7f]
        %v2576 = vld [vmem:[%s2543] ss:$2 sm:$0x7f]
        %v2577 = vld [vmem:[%s2545] ss:$2 sm:$0x7f]
        %v2578 = vld [vmem:[%s2547] ss:$2 sm:$0x7f]
        %v2579 = vld [vmem:[%s2549] ss:$2 sm:$0x7f]
        %v2580 = vld [vmem:[%s2551] ss:$2 sm:$0x7f]
        %v2581 = vld [vmem:[%s2553] ss:$2 sm:$0x7f]
        %v2582 = vld [vmem:[%s2555] ss:$2 sm:$0x7f]
        %v2583 = vld [vmem:[%s2557] ss:$2 sm:$0x7f]
        %v2584 = vld [vmem:[%s2559] ss:$2 sm:$0x7f]
        %v2585 = vld [vmem:[%s2561] ss:$2 sm:$0x7f]
        %v2586 = vld [vmem:[%s2563] ss:$2 sm:$0x7f]
        %v2587 = vld [vmem:[%s2565] ss:$2 sm:$0x7f]
        %v2588 = vld [vmem:[%s2567] ss:$2 sm:$0x7f]
        %v2589 = vld [vmem:[%s2569] ss:$2 sm:$0x7f]
        %v2590 = vld [vmem:[%s2571] ss:$2 sm:$0x7f]
        %v2591 = vld [vmem:[%s2573] ss:$2 sm:$0x7f]
        %v2609 = vrot.slane %v2575, 7
        %v2610 = vrot.slane %v2576, 7
        %v2611 = vrot.slane %v2577, 7
        %v2612 = vrot.slane %v2578, 7
        %v2613 = vrot.slane %v2579, 7
        %v2614 = vrot.slane %v2580, 7
        %v2615 = vrot.slane %v2581, 7
        %v2616 = vrot.slane %v2582, 7
        %v2617 = vrot.slane %v2583, 7
        %v2618 = vrot.slane %v2584, 7
        %v2619 = vrot.slane %v2585, 7
        %v2620 = vrot.slane %v2586, 7
        %v2621 = vrot.slane %v2587, 7
        %v2622 = vrot.slane %v2588, 7
        %v2623 = vrot.slane %v2589, 7
        %v2624 = vrot.slane %v2590, 7
        %v2625 = vrot.slane %v2591, 7
        %vm2643 = vcmask 1040384
        %v2644 = vsel %vm2643, 0.0, %v2609
        %v2645 = vsel %vm2643, 0.0, %v2610
        %v2646 = vsel %vm2643, 0.0, %v2611
        %v2647 = vsel %vm2643, 0.0, %v2612
        %v2648 = vsel %vm2643, 0.0, %v2613
        %v2649 = vsel %vm2643, 0.0, %v2614
        %v2650 = vsel %vm2643, 0.0, %v2615
        %v2651 = vsel %vm2643, 0.0, %v2616
        %v2652 = vsel %vm2643, 0.0, %v2617
        %v2653 = vsel %vm2643, 0.0, %v2618
        %v2654 = vsel %vm2643, 0.0, %v2619
        %v2655 = vsel %vm2643, 0.0, %v2620
        %v2656 = vsel %vm2643, 0.0, %v2621
        %v2657 = vsel %vm2643, 0.0, %v2622
        %v2658 = vsel %vm2643, 0.0, %v2623
        %v2659 = vsel %vm2643, 0.0, %v2624
        %v2660 = vsel %vm2643, 0.0, %v2625
        %v2661 = vmax.f32 %v2508, %v2542
        %v2662 = vmax.f32 %v2510, %v2544
        %v2663 = vmax.f32 %v2512, %v2546
        %v2664 = vmax.f32 %v2514, %v2548
        %v2665 = vmax.f32 %v2516, %v2550
        %v2666 = vmax.f32 %v2518, %v2552
        %v2667 = vmax.f32 %v2520, %v2554
        %v2668 = vmax.f32 %v2522, %v2556
        %v2669 = vmax.f32 %v2524, %v2558
        %v2670 = vmax.f32 %v2526, %v2560
        %v2671 = vmax.f32 %v2528, %v2562
        %v2672 = vmax.f32 %v2530, %v2564
        %v2673 = vmax.f32 %v2532, %v2566
        %v2674 = vmax.f32 %v2534, %v2568
        %v2675 = vmax.f32 %v2536, %v2570
        %v2676 = vmax.f32 %v2538, %v2572
        %v2677 = vmax.f32 %v2540, %v2574
        %v2678 = vmax.f32 %v2661, %v2644
        %v2679 = vmax.f32 %v2662, %v2645
        %v2680 = vmax.f32 %v2663, %v2646
        %v2681 = vmax.f32 %v2664, %v2647
        %v2682 = vmax.f32 %v2665, %v2648
        %v2683 = vmax.f32 %v2666, %v2649
        %v2684 = vmax.f32 %v2667, %v2650
        %v2685 = vmax.f32 %v2668, %v2651
        %v2686 = vmax.f32 %v2669, %v2652
        %v2687 = vmax.f32 %v2670, %v2653
        %v2688 = vmax.f32 %v2671, %v2654
        %v2689 = vmax.f32 %v2672, %v2655
        %v2690 = vmax.f32 %v2673, %v2656
        %v2691 = vmax.f32 %v2674, %v2657
        %v2692 = vmax.f32 %v2675, %v2658
        %v2693 = vmax.f32 %v2676, %v2659
        %v2694 = vmax.f32 %v2677, %v2660
        %v2695 = vmax.f32 %v2678, %v2679
        %v2696 = vmax.f32 %v2680, %v2681
        %v2697 = vmax.f32 %v2682, %v2683
        %v2698 = vmax.f32 %v2684, %v2685
        %v2699 = vmax.f32 %v2686, %v2687
        %v2700 = vmax.f32 %v2688, %v2689
        %v2701 = vmax.f32 %v2690, %v2691
        %v2702 = vmax.f32 %v2692, %v2693
        %v2703 = vmax.f32 %v2695, %v2680
        %v2704 = vmax.f32 %v2696, %v2682
        %v2705 = vmax.f32 %v2697, %v2684
        %v2706 = vmax.f32 %v2698, %v2686
        %v2707 = vmax.f32 %v2699, %v2688
        %v2708 = vmax.f32 %v2700, %v2690
        %v2709 = vmax.f32 %v2701, %v2692
        %v2710 = vmax.f32 %v2702, %v2694
        %2711 = vst.msk [vmem:[%s241] sm:$0xff] %vm1408, %v2703
        %2712 = vst.msk [vmem:[%s241 + $0x8] sm:$0xff] %vm1408, %v2704
        %2713 = vst.msk [vmem:[%s241 + $0x10] sm:$0xff] %vm1408, %v2705
        %2714 = vst.msk [vmem:[%s241 + $0x18] sm:$0xff] %vm1408, %v2706
        %2715 = vst.msk [vmem:[%s241 + $0x20] sm:$0xff] %vm1408, %v2707
        %2716 = vst.msk [vmem:[%s241 + $0x28] sm:$0xff] %vm1408, %v2708
        %2717 = vst.msk [vmem:[%s241 + $0x30] sm:$0xff] %vm1408, %v2709
        %2718 = vst.msk [vmem:[%s241 + $0x38] sm:$0xff] %vm1408, %v2710
        %s2719 = sand.u32 %s153, 1
        %s2720 = scalar_lea.sflag [#allocation5], %s2719
        %s2721 = sand.u32 %s153, 1
        %s2722 = smul.addr %s2721, 64
        %s2723 = scalar_lea.vmem [#allocation4], %s2722
        // Predicated region
        $region49: #{tpu_custom_call.1} parent=39 // pred_check
          %p2724 = pneg %p163
        $region50: #{tpu_custom_call.1} parent=39 // pred_check_branch
          %2726 = sbr.rel (%p2724) target = $region52
        $region51: #{tpu_custom_call.1} parent=39 // pred_region
          %s2727 = smul.u32 8, %s24
          %s2729 = ssub.s32 1024, 1024
          %2730 = vsyncadd %s2720, %s2729
          %s2731 = smul.addr %s23, 8
          %s2732 = sadd.s32 %s2727, %s2731
          %s2733 = smul.addr %s2732, 128
          %s2734 = scalar_lea.hbm %s5, %s2733
          %s2735 = sshll.u32 %s2723, 4
          %s2736 = int_to_ptr.vmem [resolvable:$true] %s2735
          %2741 = dma.vmem_to_hbm [thread:$0]  %s2736, 1024, %s2734, %s2720, 128, 128, 8
        $region52: #{tpu_custom_call.1} parent=39 // pred_fallthru
          _
      $region40: #{tpu_custom_call.1} parent=5 // pred_fallthru
        _
      %p2742 = scmp.le.s32.totalorder 2, %s14
      // Predicated region
      $region53: #{tpu_custom_call.1} parent=5 // pred_check
        %p2743 = pneg %p2742
      $region54: #{tpu_custom_call.1} parent=5 // pred_check_branch
        %2745 = sbr.rel (%p2743) target = $region56
      $region55: #{tpu_custom_call.1} parent=5 // pred_region
        %s2746 = ssub.s32 %s14, 2
        // Predicated region
        $region57: #{tpu_custom_call.1} parent=55 // pred_check
          %p2747 = pneg %p169
        $region58: #{tpu_custom_call.1} parent=55 // pred_check_branch
          %2749 = sbr.rel (%p2747) target = $region60
        $region59: #{tpu_custom_call.1} parent=55 // pred_region
          %s2750 = sand.u32 %s154, 1
          %s2751 = scalar_lea.sflag [#allocation5], %s2750
          %s2752 = sand.u32 %s154, 1
          %s2753 = smul.addr %s2752, 64
          %s2754 = scalar_lea.vmem [#allocation4], %s2753
          %2755 = dma.done %s2751, 1024
        $region60: #{tpu_custom_call.1} parent=55 // pred_fallthru
          _
      $region56: #{tpu_custom_call.1} parent=5 // pred_fallthru
        _
    $region6: #{tpu_custom_call.1} parent=1 // loop_footer
      %s18 = sadd.s32 1, %s14
    $region7: #{tpu_custom_call.1} parent=1 // loop_footer_branch
      %13 = sbr.rel target = $region3
    $region8: #{tpu_custom_call.1} parent=1 // loop_exit
      _
    %2756 = vsyncpa [#allocation5], 1
    %s2757 = scalar_lea.sflag [#allocation5], 1
    %2758 = vsyncpa %s2757, 1

</llo_original>
